<compile_context>
chip_gen: v6e
topology: v6e:2x2x1
jax: 0.10.0
libtpu: 0.0.40
codegen_flags: <defaults>
</compile_context>

<pallas_src>
import math
import functools

import jax
import jax.numpy as jnp
from jax import lax
from jax.experimental import pallas as pl
from jax.experimental.pallas import tpu as pltpu

LN_EPS = 1e-5                    # torch.nn.LayerNorm default eps
_INV_SQRT2 = 1.0 / math.sqrt(2.0)


# ---------------------------------------------------------------------------
# In-kernel helpers (pure jnp, traced inside the Pallas kernel)
# ---------------------------------------------------------------------------
def _layernorm(x, gamma, beta):
    mean = jnp.mean(x, axis=-1, keepdims=True)
    var = jnp.mean((x - mean) ** 2, axis=-1, keepdims=True)
    return (x - mean) * lax.rsqrt(var + LN_EPS) * gamma + beta


def _erf(x):
    # Abramowitz & Stegun 7.1.26 (|err| < 1.5e-7): keeps parity with torch.nn.GELU()
    # (exact, erf-based) far below typical tolerances; the exp() runs on the EUP.
    # TODO(synk): switch to jax.lax.erf (pure EUP) once erf_p lowering is guaranteed
    # in Mosaic; kept as a polynomial here so the kernel is certain to lower.
    a1, a2, a3, a4, a5 = 0.254829592, -0.284496736, 1.421413741, -1.453152027, 1.061405429
    p = 0.3275911
    sgn = jnp.where(x >= 0.0, 1.0, -1.0)
    ax = jnp.abs(x)
    t = 1.0 / (1.0 + p * ax)
    poly = ((((a5 * t + a4) * t + a3) * t + a2) * t + a1) * t
    return sgn * (1.0 - poly * jnp.exp(-ax * ax))


def _gelu_exact(x):
    # Matches torch.nn.GELU() (exact, erf based).
    return 0.5 * x * (1.0 + _erf(x * _INV_SQRT2))


# ---------------------------------------------------------------------------
# Fused per-layer kernel: LN1 + QKV + attention + o_proj + residual + LN2 + MLP + residual
# Grid: (B,) — one batch element per grid step; all heads handled inside the kernel.
# ---------------------------------------------------------------------------
def _layer_kernel(x_ref, g1_ref, b1_ref, wqkv_ref, wo_ref, bo_ref,
                  g2_ref, b2_ref, w1_ref, bm1_ref, w2_ref, bm2_ref,
                  out_ref, scores_ref,
                  *, num_heads, dqk, dv, inv_temp, mm_dtype):
    x = x_ref[0]                                             # (N, C), f32
    dqk_total = num_heads * dqk

    # ---- LN1 + fused QKV projection (single wide, lane-dense matmul) ----
    xn = _layernorm(x, g1_ref[...], b1_ref[...])             # f32 statistics
    qkv = jnp.dot(xn.astype(mm_dtype), wqkv_ref[...],
                  preferred_element_type=jnp.float32)        # (N, 2*Dqk + Dv), f32

    # Fold 1/temperature into q before the QK contraction.
    q = (qkv[:, :dqk_total] * inv_temp).astype(mm_dtype)
    k = qkv[:, dqk_total:2 * dqk_total].astype(mm_dtype)
    v = qkv[:, 2 * dqk_total:].astype(mm_dtype)

    # ---- all heads in-kernel: static lane slices, no XLA transposes ----
    ctx_heads = []
    for h in range(num_heads):
        qh = q[:, h * dqk:(h + 1) * dqk]                     # (N, dqk)
        kh = k[:, h * dqk:(h + 1) * dqk]                     # (N, dqk)
        vh = v[:, h * dv:(h + 1) * dv]                       # (N, dv)
        # Contract the last dims directly — no .T, no XLU transpose of the K tile.
        s = lax.dot_general(qh, kh, (((1,), (1,)), ((), ())),
                            preferred_element_type=jnp.float32)   # (N, N), f32
        m = jnp.max(s, axis=-1, keepdims=True)
        e = jnp.exp(s - m)
        denom = jnp.sum(e, axis=-1, keepdims=True)
        p = e * pl.reciprocal(denom, approx=True)            # divide -> EUP slot
        scores_ref[0, h] = p.astype(scores_ref.dtype)
        ctx_heads.append(jnp.dot(p.astype(mm_dtype), vh,
                                 preferred_element_type=jnp.float32))
    # '(b h) n c -> b n (h c)' merge == concat along channels in head order.
    ctx = jnp.concatenate(ctx_heads, axis=-1)                # (N, Dv), f32

    # ---- output projection + bias + residual (fused, no HBM round-trip) ----
    out1 = (jnp.dot(ctx.astype(mm_dtype), wo_ref[...],
                    preferred_element_type=jnp.float32)
            + bo_ref[...] + x)                               # attention dropout = identity

    # ---- LN2 + MLP (Linear -> GELU -> Linear) + residual (fused) ----
    xn2 = _layernorm(out1, g2_ref[...], b2_ref[...])
    hmid = jnp.dot(xn2.astype(mm_dtype), w1_ref[...],
                   preferred_element_type=jnp.float32) + bm1_ref[...]
    hmid = _gelu_exact(hmid)                                 # f32 elementwise (v5e-safe)
    y = jnp.dot(hmid.astype(mm_dtype), w2_ref[...],
                preferred_element_type=jnp.float32) + bm2_ref[...]
    out_ref[0] = y + out1                                    # mlp dropout = identity


# ---------------------------------------------------------------------------
# Wrapper: one pallas_call per SelfAttentionLayer forward
# ---------------------------------------------------------------------------
def self_attention_layer(x, p, num_heads, *,
                         matmul_dtype=jnp.float32,
                         scores_dtype=jnp.float32,
                         vmem_limit_bytes=None):
    """Forward of SelfAttentionLayer. Returns (out, attention_scores).

    matmul_dtype: dtype of MXU operands (weights + activations feeding jnp.dot).
        jnp.bfloat16 recommended on v6e/v7x (and fine on v5e); accumulation and all
        elementwise / LayerNorm / softmax math stay in f32.
    scores_dtype: dtype of the returned attention-scores tensor (bf16 halves the
        largest HBM write on v5e if the consumer tolerates it).
    vmem_limit_bytes: raise Mosaic's scoped VMEM limit for production channel sizes.
    """
    B, N, C = x.shape
    Dqk = p["wq"].shape[1]
    Dv = p["wv"].shape[1]
    Wc = p["w1"].shape[1]
    dqk = Dqk // num_heads
    dv = Dv // num_heads
    inv_temp = 1.0 / (float(dqk) ** 0.5)   # temperature = (num_qk_proj // num_heads)**0.5

    # Fused QKV weight: one (C, 2*Dqk+Dv) matmul instead of three narrow ones.
    wqkv = jnp.concatenate([p["wq"], p["wk"], p["wv"]], axis=1).astype(matmul_dtype)
    wo = p["wo"].astype(matmul_dtype)
    w1 = p["w1"].astype(matmul_dtype)
    w2 = p["w2"].astype(matmul_dtype)

    kernel = functools.partial(
        _layer_kernel, num_heads=num_heads, dqk=dqk, dv=dv,
        inv_temp=inv_temp, mm_dtype=matmul_dtype)

    cp_kwargs = dict(dimension_semantics=("parallel",))
    if vmem_limit_bytes is not None:
        cp_kwargs["vmem_limit_bytes"] = vmem_limit_bytes

    rep = lambda b: (0, 0)               # weights/biases: constant block -> DMA'd once
    per_batch = lambda b: (b, 0, 0)

    out, scores = pl.pallas_call(
        kernel,
        out_shape=(
            jax.ShapeDtypeStruct((B, N, C), jnp.float32),
            jax.ShapeDtypeStruct((B, num_heads, N, N), scores_dtype),
        ),
        grid=(B,),
        in_specs=[
            pl.BlockSpec((1, N, C), per_batch),          # x
            pl.BlockSpec((1, C), rep),                   # ln1 gamma
            pl.BlockSpec((1, C), rep),                   # ln1 beta
            pl.BlockSpec((C, 2 * Dqk + Dv), rep),        # fused Wqkv
            pl.BlockSpec((Dv, C), rep),                  # Wo
            pl.BlockSpec((1, C), rep),                   # bo
            pl.BlockSpec((1, C), rep),                   # ln2 gamma
            pl.BlockSpec((1, C), rep),                   # ln2 beta
            pl.BlockSpec((C, Wc), rep),                  # W1
            pl.BlockSpec((1, Wc), rep),                  # b1
            pl.BlockSpec((Wc, C), rep),                  # W2
            pl.BlockSpec((1, C), rep),                   # b2
        ],
        out_specs=(
            pl.BlockSpec((1, N, C), per_batch),
            pl.BlockSpec((1, num_heads, N, N), lambda b: (b, 0, 0, 0)),
        ),
        compiler_params=pltpu.CompilerParams(**cp_kwargs),
    )(x, p["ln1_g"], p["ln1_b"], wqkv, wo, p["bo"],
      p["ln2_g"], p["ln2_b"], w1, p["b1"], w2, p["b2"])

    # Reference layout '(b h) n c': pure reshape, no transpose / extra HBM traffic.
    return out, scores.reshape(B * num_heads, N, N)


# ---------------------------------------------------------------------------
# Deterministic synthetic parameters (mirrors the module's __init__ shapes)
# ---------------------------------------------------------------------------
def init_layer_params(key, num_channels, num_qk_proj, num_v_proj, widening_factor):
    C, Dqk, Dv = num_channels, num_qk_proj, num_v_proj
    Wc = widening_factor * C
    key, *ks = jax.random.split(key, 10)
    nrm = lambda k, shape: 0.05 * jax.random.normal(k, shape, jnp.float32)
    return dict(
        ln1_g=jnp.ones((1, C), jnp.float32),
        ln1_b=jnp.zeros((1, C), jnp.float32),
        wq=nrm(ks[0], (C, Dqk)),      # stored (in, out): y = x @ W
        wk=nrm(ks[1], (C, Dqk)),
        wv=nrm(ks[2], (C, Dv)),
        wo=nrm(ks[3], (Dv, C)),
        bo=nrm(ks[4], (1, C)),
        ln2_g=jnp.ones((1, C), jnp.float32),
        ln2_b=jnp.zeros((1, C), jnp.float32),
        w1=nrm(ks[5], (C, Wc)),
        b1=nrm(ks[6], (1, Wc)),
        w2=nrm(ks[7], (Wc, C)),
        b2=nrm(ks[8], (1, C)),
    )


if __name__ == "__main__":
    # Small config consistent with the module: B=2, seq N=8, channels C=32,
    # 4 heads, qk/v projection dims = 32, widening factor = 2.
    B, N, C = 2, 8, 32
    num_heads = 4
    num_qk_proj, num_v_proj = 32, 32
    widening_factor = 2

    key = jax.random.PRNGKey(0)
    key, xk = jax.random.split(key)
    x = jax.random.normal(xk, (B, N, C), jnp.float32)
    params = init_layer_params(key, C, num_qk_proj, num_v_proj, widening_factor)

    # f32 MXU-operand path (closest parity with the f32 PyTorch reference).
    out, scores = self_attention_layer(x, params, num_heads)
    out = jax.block_until_ready(out)
    scores = jax.block_until_ready(scores)
    assert out.shape == (B, N, C)
    assert scores.shape == (B * num_heads, N, N)

    # bf16 MXU-operand path (v6e/v7x recommendation): f32 accumulation and f32
    # LayerNorm/softmax/GELU statistics are preserved inside the kernel.
    out_bf16, scores_bf16 = self_attention_layer(
        x, params, num_heads, matmul_dtype=jnp.bfloat16)
    jax.block_until_ready(out_bf16)
    jax.block_until_ready(scores_bf16)
    assert out_bf16.shape == (B, N, C)

    print("KERNEL_OK")
</pallas_src>

<mosaic_0001>
module attributes {stable_mosaic.version = 11 : i64} {
  func.func @_layer_kernel(%arg0: i32, %arg1: memref<1x8x32xf32, #tpu.memory_space<vmem>>, %arg2: memref<1x32xf32, #tpu.memory_space<vmem>>, %arg3: memref<1x32xf32, #tpu.memory_space<vmem>>, %arg4: memref<32x96xf32, #tpu.memory_space<vmem>>, %arg5: memref<32x32xf32, #tpu.memory_space<vmem>>, %arg6: memref<1x32xf32, #tpu.memory_space<vmem>>, %arg7: memref<1x32xf32, #tpu.memory_space<vmem>>, %arg8: memref<1x32xf32, #tpu.memory_space<vmem>>, %arg9: memref<32x64xf32, #tpu.memory_space<vmem>>, %arg10: memref<1x64xf32, #tpu.memory_space<vmem>>, %arg11: memref<64x32xf32, #tpu.memory_space<vmem>>, %arg12: memref<1x32xf32, #tpu.memory_space<vmem>>, %arg13: memref<1x8x32xf32, #tpu.memory_space<vmem>>, %arg14: memref<1x4x8x8xf32, #tpu.memory_space<vmem>>) attributes {dimension_semantics = [#tpu.dimension_semantics<parallel>], iteration_bounds = array<i64: 2>, scalar_prefetch = 0 : i64, scratch_operands = 0 : i64, tpu.core_type = #tpu.core_type<tc>, window_params = [{transform_indices = @transform_0, window_bounds = array<i64: 1, 8, 32>}, {pipeline_mode = #tpu.pipeline_mode<synchronous>, transform_indices = @transform_1, window_bounds = array<i64: 1, 32>}, {pipeline_mode = #tpu.pipeline_mode<synchronous>, transform_indices = @transform_2, window_bounds = array<i64: 1, 32>}, {pipeline_mode = #tpu.pipeline_mode<synchronous>, transform_indices = @transform_3, window_bounds = array<i64: 32, 96>}, {pipeline_mode = #tpu.pipeline_mode<synchronous>, transform_indices = @transform_4, window_bounds = array<i64: 32, 32>}, {pipeline_mode = #tpu.pipeline_mode<synchronous>, transform_indices = @transform_5, window_bounds = array<i64: 1, 32>}, {pipeline_mode = #tpu.pipeline_mode<synchronous>, transform_indices = @transform_6, window_bounds = array<i64: 1, 32>}, {pipeline_mode = #tpu.pipeline_mode<synchronous>, transform_indices = @transform_7, window_bounds = array<i64: 1, 32>}, {pipeline_mode = #tpu.pipeline_mode<synchronous>, transform_indices = @transform_8, window_bounds = array<i64: 32, 64>}, {pipeline_mode = #tpu.pipeline_mode<synchronous>, transform_indices = @transform_9, window_bounds = array<i64: 1, 64>}, {pipeline_mode = #tpu.pipeline_mode<synchronous>, transform_indices = @transform_10, window_bounds = array<i64: 64, 32>}, {pipeline_mode = #tpu.pipeline_mode<synchronous>, transform_indices = @transform_11, window_bounds = array<i64: 1, 32>}, {transform_indices = @transform_12, window_bounds = array<i64: 1, 8, 32>}, {transform_indices = @transform_13, window_bounds = array<i64: 1, 4, 8, 8>}]} {
    %c0 = arith.constant 0 : index
    %c0_0 = arith.constant 0 : index
    %c0_1 = arith.constant 0 : index
    %0 = vector.load %arg1[%c0, %c0_0, %c0_1] : memref<1x8x32xf32, #tpu.memory_space<vmem>>, vector<1x8x32xf32>
    %1 = vector.shape_cast %0 : vector<1x8x32xf32> to vector<8x32xf32>
    %c0_2 = arith.constant 0 : index
    %c0_3 = arith.constant 0 : index
    %2 = vector.load %arg2[%c0_2, %c0_3] : memref<1x32xf32, #tpu.memory_space<vmem>>, vector<1x32xf32>
    %c0_4 = arith.constant 0 : index
    %c0_5 = arith.constant 0 : index
    %3 = vector.load %arg3[%c0_4, %c0_5] : memref<1x32xf32, #tpu.memory_space<vmem>>, vector<1x32xf32>
    %cst = arith.constant dense<0.000000e+00> : vector<8xf32>
    %4 = vector.multi_reduction <add>, %1, %cst [1] : vector<8x32xf32> to vector<8xf32>
    %5 = vector.shape_cast %4 : vector<8xf32> to vector<8x1xf32>
    %cst_6 = arith.constant 3.200000e+01 : f32
    %6 = vector.broadcast %cst_6 : f32 to vector<8x1xf32>
    %7 = arith.divf %5, %6 : vector<8x1xf32>
    %8 = vector.broadcast %7 : vector<8x1xf32> to vector<8x32xf32>
    %9 = arith.subf %1, %8 : vector<8x32xf32>
    %10 = arith.mulf %9, %9 : vector<8x32xf32>
    %cst_7 = arith.constant dense<0.000000e+00> : vector<8xf32>
    %11 = vector.multi_reduction <add>, %10, %cst_7 [1] : vector<8x32xf32> to vector<8xf32>
    %12 = vector.shape_cast %11 : vector<8xf32> to vector<8x1xf32>
    %cst_8 = arith.constant 3.200000e+01 : f32
    %13 = vector.broadcast %cst_8 : f32 to vector<8x1xf32>
    %14 = arith.divf %12, %13 : vector<8x1xf32>
    %15 = vector.broadcast %7 : vector<8x1xf32> to vector<8x32xf32>
    %16 = arith.subf %1, %15 : vector<8x32xf32>
    %cst_9 = arith.constant 9.99999974E-6 : f32
    %17 = vector.broadcast %cst_9 : f32 to vector<8x1xf32>
    %18 = arith.addf %14, %17 : vector<8x1xf32>
    %19 = math.rsqrt %18 : vector<8x1xf32>
    %20 = vector.broadcast %19 : vector<8x1xf32> to vector<8x32xf32>
    %21 = arith.mulf %16, %20 : vector<8x32xf32>
    %22 = vector.broadcast %2 : vector<1x32xf32> to vector<8x32xf32>
    %23 = arith.mulf %21, %22 : vector<8x32xf32>
    %24 = vector.broadcast %3 : vector<1x32xf32> to vector<8x32xf32>
    %25 = arith.addf %23, %24 : vector<8x32xf32>
    %c0_10 = arith.constant 0 : index
    %c0_11 = arith.constant 0 : index
    %26 = vector.load %arg4[%c0_10, %c0_11] : memref<32x96xf32, #tpu.memory_space<vmem>>, vector<32x96xf32>
    %cst_12 = arith.constant dense<0.000000e+00> : vector<8x96xf32>
    %27 = tpu.matmul %25, %26, %cst_12 {dimension_numbers = #tpu.dot_dimension_numbers<[1], [0], [0], [1], [0, 0, 1, 1], [], []>} : vector<8x32xf32>, vector<32x96xf32>, vector<8x96xf32> -> vector<8x96xf32>
    %28 = vector.extract_strided_slice %27 {offsets = [0, 0], sizes = [8, 32], strides = [1, 1]} : vector<8x96xf32> to vector<8x32xf32>
    %cst_13 = arith.constant 0.353553385 : f32
    %29 = vector.broadcast %cst_13 : f32 to vector<8x32xf32>
    %30 = arith.mulf %28, %29 : vector<8x32xf32>
    %31 = vector.extract_strided_slice %27 {offsets = [0, 32], sizes = [8, 32], strides = [1, 1]} : vector<8x96xf32> to vector<8x32xf32>
    %32 = vector.extract_strided_slice %27 {offsets = [0, 64], sizes = [8, 32], strides = [1, 1]} : vector<8x96xf32> to vector<8x32xf32>
    %33 = vector.extract_strided_slice %30 {offsets = [0, 0], sizes = [8, 8], strides = [1, 1]} : vector<8x32xf32> to vector<8x8xf32>
    %34 = vector.extract_strided_slice %31 {offsets = [0, 0], sizes = [8, 8], strides = [1, 1]} : vector<8x32xf32> to vector<8x8xf32>
    %35 = vector.extract_strided_slice %32 {offsets = [0, 0], sizes = [8, 8], strides = [1, 1]} : vector<8x32xf32> to vector<8x8xf32>
    %cst_14 = arith.constant dense<0.000000e+00> : vector<8x8xf32>
    %36 = tpu.matmul %33, %34, %cst_14 {dimension_numbers = #tpu.dot_dimension_numbers<[1], [1], [0], [0], [0, 0, 1, 0], [], []>} : vector<8x8xf32>, vector<8x8xf32>, vector<8x8xf32> -> vector<8x8xf32>
    %cst_15 = arith.constant dense<0xFF800000> : vector<8xf32>
    %37 = vector.multi_reduction <maximumf>, %36, %cst_15 [1] : vector<8x8xf32> to vector<8xf32>
    %38 = vector.shape_cast %37 : vector<8xf32> to vector<8x1xf32>
    %39 = vector.broadcast %38 : vector<8x1xf32> to vector<8x8xf32>
    %40 = arith.subf %36, %39 : vector<8x8xf32>
    %41 = math.exp %40 : vector<8x8xf32>
    %cst_16 = arith.constant dense<0.000000e+00> : vector<8xf32>
    %42 = vector.multi_reduction <add>, %41, %cst_16 [1] : vector<8x8xf32> to vector<8xf32>
    %43 = vector.shape_cast %42 : vector<8xf32> to vector<8x1xf32>
    %44 = tpu.reciprocal %43 {approx = true} : vector<8x1xf32> -> vector<8x1xf32>
    %45 = vector.broadcast %44 : vector<8x1xf32> to vector<8x8xf32>
    %46 = arith.mulf %41, %45 : vector<8x8xf32>
    %c0_17 = arith.constant 0 : index
    %c0_18 = arith.constant 0 : index
    %c0_19 = arith.constant 0 : index
    %c0_20 = arith.constant 0 : index
    %47 = vector.load %arg14[%c0_17, %c0_18, %c0_19, %c0_20] : memref<1x4x8x8xf32, #tpu.memory_space<vmem>>, vector<1x1x8x8xf32>
    %48 = vector.shape_cast %47 : vector<1x1x8x8xf32> to vector<8x8xf32>
    %49 = vector.shape_cast %46 : vector<8x8xf32> to vector<1x1x8x8xf32>
    tpu.vector_store %arg14[%c0_17, %c0_18, %c0_19, %c0_20], %49 {strides = array<i32>} : memref<1x4x8x8xf32, #tpu.memory_space<vmem>>, vector<1x1x8x8xf32>,
    %cst_21 = arith.constant dense<0.000000e+00> : vector<8x8xf32>
    %50 = tpu.matmul %46, %35, %cst_21 {dimension_numbers = #tpu.dot_dimension_numbers<[1], [0], [0], [1], [0, 0, 1, 1], [], []>} : vector<8x8xf32>, vector<8x8xf32>, vector<8x8xf32> -> vector<8x8xf32>
    %51 = vector.extract_strided_slice %30 {offsets = [0, 8], sizes = [8, 8], strides = [1, 1]} : vector<8x32xf32> to vector<8x8xf32>
    %52 = vector.extract_strided_slice %31 {offsets = [0, 8], sizes = [8, 8], strides = [1, 1]} : vector<8x32xf32> to vector<8x8xf32>
    %53 = vector.extract_strided_slice %32 {offsets = [0, 8], sizes = [8, 8], strides = [1, 1]} : vector<8x32xf32> to vector<8x8xf32>
    %cst_22 = arith.constant dense<0.000000e+00> : vector<8x8xf32>
    %54 = tpu.matmul %51, %52, %cst_22 {dimension_numbers = #tpu.dot_dimension_numbers<[1], [1], [0], [0], [0, 0, 1, 0], [], []>} : vector<8x8xf32>, vector<8x8xf32>, vector<8x8xf32> -> vector<8x8xf32>
    %cst_23 = arith.constant dense<0xFF800000> : vector<8xf32>
    %55 = vector.multi_reduction <maximumf>, %54, %cst_23 [1] : vector<8x8xf32> to vector<8xf32>
    %56 = vector.shape_cast %55 : vector<8xf32> to vector<8x1xf32>
    %57 = vector.broadcast %56 : vector<8x1xf32> to vector<8x8xf32>
    %58 = arith.subf %54, %57 : vector<8x8xf32>
    %59 = math.exp %58 : vector<8x8xf32>
    %cst_24 = arith.constant dense<0.000000e+00> : vector<8xf32>
    %60 = vector.multi_reduction <add>, %59, %cst_24 [1] : vector<8x8xf32> to vector<8xf32>
    %61 = vector.shape_cast %60 : vector<8xf32> to vector<8x1xf32>
    %62 = tpu.reciprocal %61 {approx = true} : vector<8x1xf32> -> vector<8x1xf32>
    %63 = vector.broadcast %62 : vector<8x1xf32> to vector<8x8xf32>
    %64 = arith.mulf %59, %63 : vector<8x8xf32>
    %c0_25 = arith.constant 0 : index
    %c1 = arith.constant 1 : index
    %c0_26 = arith.constant 0 : index
    %c0_27 = arith.constant 0 : index
    %65 = vector.load %arg14[%c0_25, %c1, %c0_26, %c0_27] : memref<1x4x8x8xf32, #tpu.memory_space<vmem>>, vector<1x1x8x8xf32>
    %66 = vector.shape_cast %65 : vector<1x1x8x8xf32> to vector<8x8xf32>
    %67 = vector.shape_cast %64 : vector<8x8xf32> to vector<1x1x8x8xf32>
    tpu.vector_store %arg14[%c0_25, %c1, %c0_26, %c0_27], %67 {strides = array<i32>} : memref<1x4x8x8xf32, #tpu.memory_space<vmem>>, vector<1x1x8x8xf32>,
    %cst_28 = arith.constant dense<0.000000e+00> : vector<8x8xf32>
    %68 = tpu.matmul %64, %53, %cst_28 {dimension_numbers = #tpu.dot_dimension_numbers<[1], [0], [0], [1], [0, 0, 1, 1], [], []>} : vector<8x8xf32>, vector<8x8xf32>, vector<8x8xf32> -> vector<8x8xf32>
    %69 = vector.extract_strided_slice %30 {offsets = [0, 16], sizes = [8, 8], strides = [1, 1]} : vector<8x32xf32> to vector<8x8xf32>
    %70 = vector.extract_strided_slice %31 {offsets = [0, 16], sizes = [8, 8], strides = [1, 1]} : vector<8x32xf32> to vector<8x8xf32>
    %71 = vector.extract_strided_slice %32 {offsets = [0, 16], sizes = [8, 8], strides = [1, 1]} : vector<8x32xf32> to vector<8x8xf32>
    %cst_29 = arith.constant dense<0.000000e+00> : vector<8x8xf32>
    %72 = tpu.matmul %69, %70, %cst_29 {dimension_numbers = #tpu.dot_dimension_numbers<[1], [1], [0], [0], [0, 0, 1, 0], [], []>} : vector<8x8xf32>, vector<8x8xf32>, vector<8x8xf32> -> vector<8x8xf32>
    %cst_30 = arith.constant dense<0xFF800000> : vector<8xf32>
    %73 = vector.multi_reduction <maximumf>, %72, %cst_30 [1] : vector<8x8xf32> to vector<8xf32>
    %74 = vector.shape_cast %73 : vector<8xf32> to vector<8x1xf32>
    %75 = vector.broadcast %74 : vector<8x1xf32> to vector<8x8xf32>
    %76 = arith.subf %72, %75 : vector<8x8xf32>
    %77 = math.exp %76 : vector<8x8xf32>
    %cst_31 = arith.constant dense<0.000000e+00> : vector<8xf32>
    %78 = vector.multi_reduction <add>, %77, %cst_31 [1] : vector<8x8xf32> to vector<8xf32>
    %79 = vector.shape_cast %78 : vector<8xf32> to vector<8x1xf32>
    %80 = tpu.reciprocal %79 {approx = true} : vector<8x1xf32> -> vector<8x1xf32>
    %81 = vector.broadcast %80 : vector<8x1xf32> to vector<8x8xf32>
    %82 = arith.mulf %77, %81 : vector<8x8xf32>
    %c0_32 = arith.constant 0 : index
    %c2 = arith.constant 2 : index
    %c0_33 = arith.constant 0 : index
    %c0_34 = arith.constant 0 : index
    %83 = vector.load %arg14[%c0_32, %c2, %c0_33, %c0_34] : memref<1x4x8x8xf32, #tpu.memory_space<vmem>>, vector<1x1x8x8xf32>
    %84 = vector.shape_cast %83 : vector<1x1x8x8xf32> to vector<8x8xf32>
    %85 = vector.shape_cast %82 : vector<8x8xf32> to vector<1x1x8x8xf32>
    tpu.vector_store %arg14[%c0_32, %c2, %c0_33, %c0_34], %85 {strides = array<i32>} : memref<1x4x8x8xf32, #tpu.memory_space<vmem>>, vector<1x1x8x8xf32>,
    %cst_35 = arith.constant dense<0.000000e+00> : vector<8x8xf32>
    %86 = tpu.matmul %82, %71, %cst_35 {dimension_numbers = #tpu.dot_dimension_numbers<[1], [0], [0], [1], [0, 0, 1, 1], [], []>} : vector<8x8xf32>, vector<8x8xf32>, vector<8x8xf32> -> vector<8x8xf32>
    %87 = vector.extract_strided_slice %30 {offsets = [0, 24], sizes = [8, 8], strides = [1, 1]} : vector<8x32xf32> to vector<8x8xf32>
    %88 = vector.extract_strided_slice %31 {offsets = [0, 24], sizes = [8, 8], strides = [1, 1]} : vector<8x32xf32> to vector<8x8xf32>
    %89 = vector.extract_strided_slice %32 {offsets = [0, 24], sizes = [8, 8], strides = [1, 1]} : vector<8x32xf32> to vector<8x8xf32>
    %cst_36 = arith.constant dense<0.000000e+00> : vector<8x8xf32>
    %90 = tpu.matmul %87, %88, %cst_36 {dimension_numbers = #tpu.dot_dimension_numbers<[1], [1], [0], [0], [0, 0, 1, 0], [], []>} : vector<8x8xf32>, vector<8x8xf32>, vector<8x8xf32> -> vector<8x8xf32>
    %cst_37 = arith.constant dense<0xFF800000> : vector<8xf32>
    %91 = vector.multi_reduction <maximumf>, %90, %cst_37 [1] : vector<8x8xf32> to vector<8xf32>
    %92 = vector.shape_cast %91 : vector<8xf32> to vector<8x1xf32>
    %93 = vector.broadcast %92 : vector<8x1xf32> to vector<8x8xf32>
    %94 = arith.subf %90, %93 : vector<8x8xf32>
    %95 = math.exp %94 : vector<8x8xf32>
    %cst_38 = arith.constant dense<0.000000e+00> : vector<8xf32>
    %96 = vector.multi_reduction <add>, %95, %cst_38 [1] : vector<8x8xf32> to vector<8xf32>
    %97 = vector.shape_cast %96 : vector<8xf32> to vector<8x1xf32>
    %98 = tpu.reciprocal %97 {approx = true} : vector<8x1xf32> -> vector<8x1xf32>
    %99 = vector.broadcast %98 : vector<8x1xf32> to vector<8x8xf32>
    %100 = arith.mulf %95, %99 : vector<8x8xf32>
    %c0_39 = arith.constant 0 : index
    %c3 = arith.constant 3 : index
    %c0_40 = arith.constant 0 : index
    %c0_41 = arith.constant 0 : index
    %101 = vector.load %arg14[%c0_39, %c3, %c0_40, %c0_41] : memref<1x4x8x8xf32, #tpu.memory_space<vmem>>, vector<1x1x8x8xf32>
    %102 = vector.shape_cast %101 : vector<1x1x8x8xf32> to vector<8x8xf32>
    %103 = vector.shape_cast %100 : vector<8x8xf32> to vector<1x1x8x8xf32>
    tpu.vector_store %arg14[%c0_39, %c3, %c0_40, %c0_41], %103 {strides = array<i32>} : memref<1x4x8x8xf32, #tpu.memory_space<vmem>>, vector<1x1x8x8xf32>,
    %cst_42 = arith.constant dense<0.000000e+00> : vector<8x8xf32>
    %104 = tpu.matmul %100, %89, %cst_42 {dimension_numbers = #tpu.dot_dimension_numbers<[1], [0], [0], [1], [0, 0, 1, 1], [], []>} : vector<8x8xf32>, vector<8x8xf32>, vector<8x8xf32> -> vector<8x8xf32>
    %105 = tpu.concatenate %50, %68, %86, %104 in 1 : vector<8x8xf32>, vector<8x8xf32>, vector<8x8xf32>, vector<8x8xf32> -> vector<8x32xf32>
    %c0_43 = arith.constant 0 : index
    %c0_44 = arith.constant 0 : index
    %106 = vector.load %arg5[%c0_43, %c0_44] : memref<32x32xf32, #tpu.memory_space<vmem>>, vector<32x32xf32>
    %cst_45 = arith.constant dense<0.000000e+00> : vector<8x32xf32>
    %107 = tpu.matmul %105, %106, %cst_45 {dimension_numbers = #tpu.dot_dimension_numbers<[1], [0], [0], [1], [0, 0, 1, 1], [], []>} : vector<8x32xf32>, vector<32x32xf32>, vector<8x32xf32> -> vector<8x32xf32>
    %c0_46 = arith.constant 0 : index
    %c0_47 = arith.constant 0 : index
    %108 = vector.load %arg6[%c0_46, %c0_47] : memref<1x32xf32, #tpu.memory_space<vmem>>, vector<1x32xf32>
    %109 = vector.broadcast %108 : vector<1x32xf32> to vector<8x32xf32>
    %110 = arith.addf %107, %109 : vector<8x32xf32>
    %111 = arith.addf %110, %1 : vector<8x32xf32>
    %c0_48 = arith.constant 0 : index
    %c0_49 = arith.constant 0 : index
    %112 = vector.load %arg7[%c0_48, %c0_49] : memref<1x32xf32, #tpu.memory_space<vmem>>, vector<1x32xf32>
    %c0_50 = arith.constant 0 : index
    %c0_51 = arith.constant 0 : index
    %113 = vector.load %arg8[%c0_50, %c0_51] : memref<1x32xf32, #tpu.memory_space<vmem>>, vector<1x32xf32>
    %cst_52 = arith.constant dense<0.000000e+00> : vector<8xf32>
    %114 = vector.multi_reduction <add>, %111, %cst_52 [1] : vector<8x32xf32> to vector<8xf32>
    %115 = vector.shape_cast %114 : vector<8xf32> to vector<8x1xf32>
    %cst_53 = arith.constant 3.200000e+01 : f32
    %116 = vector.broadcast %cst_53 : f32 to vector<8x1xf32>
    %117 = arith.divf %115, %116 : vector<8x1xf32>
    %118 = vector.broadcast %117 : vector<8x1xf32> to vector<8x32xf32>
    %119 = arith.subf %111, %118 : vector<8x32xf32>
    %120 = arith.mulf %119, %119 : vector<8x32xf32>
    %cst_54 = arith.constant dense<0.000000e+00> : vector<8xf32>
    %121 = vector.multi_reduction <add>, %120, %cst_54 [1] : vector<8x32xf32> to vector<8xf32>
    %122 = vector.shape_cast %121 : vector<8xf32> to vector<8x1xf32>
    %cst_55 = arith.constant 3.200000e+01 : f32
    %123 = vector.broadcast %cst_55 : f32 to vector<8x1xf32>
    %124 = arith.divf %122, %123 : vector<8x1xf32>
    %125 = vector.broadcast %117 : vector<8x1xf32> to vector<8x32xf32>
    %126 = arith.subf %111, %125 : vector<8x32xf32>
    %cst_56 = arith.constant 9.99999974E-6 : f32
    %127 = vector.broadcast %cst_56 : f32 to vector<8x1xf32>
    %128 = arith.addf %124, %127 : vector<8x1xf32>
    %129 = math.rsqrt %128 : vector<8x1xf32>
    %130 = vector.broadcast %129 : vector<8x1xf32> to vector<8x32xf32>
    %131 = arith.mulf %126, %130 : vector<8x32xf32>
    %132 = vector.broadcast %112 : vector<1x32xf32> to vector<8x32xf32>
    %133 = arith.mulf %131, %132 : vector<8x32xf32>
    %134 = vector.broadcast %113 : vector<1x32xf32> to vector<8x32xf32>
    %135 = arith.addf %133, %134 : vector<8x32xf32>
    %c0_57 = arith.constant 0 : index
    %c0_58 = arith.constant 0 : index
    %136 = vector.load %arg9[%c0_57, %c0_58] : memref<32x64xf32, #tpu.memory_space<vmem>>, vector<32x64xf32>
    %cst_59 = arith.constant dense<0.000000e+00> : vector<8x64xf32>
    %137 = tpu.matmul %135, %136, %cst_59 {dimension_numbers = #tpu.dot_dimension_numbers<[1], [0], [0], [1], [0, 0, 1, 1], [], []>} : vector<8x32xf32>, vector<32x64xf32>, vector<8x64xf32> -> vector<8x64xf32>
    %c0_60 = arith.constant 0 : index
    %c0_61 = arith.constant 0 : index
    %138 = vector.load %arg10[%c0_60, %c0_61] : memref<1x64xf32, #tpu.memory_space<vmem>>, vector<1x64xf32>
    %139 = vector.broadcast %138 : vector<1x64xf32> to vector<8x64xf32>
    %140 = arith.addf %137, %139 : vector<8x64xf32>
    %cst_62 = arith.constant 5.000000e-01 : f32
    %141 = vector.broadcast %cst_62 : f32 to vector<8x64xf32>
    %142 = arith.mulf %141, %140 : vector<8x64xf32>
    %cst_63 = arith.constant 0.707106769 : f32
    %143 = vector.broadcast %cst_63 : f32 to vector<8x64xf32>
    %144 = arith.mulf %140, %143 : vector<8x64xf32>
    %cst_64 = arith.constant 0.000000e+00 : f32
    %145 = vector.broadcast %cst_64 : f32 to vector<8x64xf32>
    %146 = arith.cmpf oge, %144, %145 : vector<8x64xf32>
    %cst_65 = arith.constant 1.000000e+00 : f32
    %cst_66 = arith.constant -1.000000e+00 : f32
    %147 = vector.broadcast %cst_65 : f32 to vector<8x64xf32>
    %148 = vector.broadcast %cst_66 : f32 to vector<8x64xf32>
    %149 = arith.select %146, %147, %148 : vector<8x64xi1>, vector<8x64xf32>
    %150 = math.absf %144 : vector<8x64xf32>
    %cst_67 = arith.constant 0.327591091 : f32
    %151 = vector.broadcast %cst_67 : f32 to vector<8x64xf32>
    %152 = arith.mulf %151, %150 : vector<8x64xf32>
    %cst_68 = arith.constant 1.000000e+00 : f32
    %153 = vector.broadcast %cst_68 : f32 to vector<8x64xf32>
    %154 = arith.addf %153, %152 : vector<8x64xf32>
    %cst_69 = arith.constant 1.000000e+00 : f32
    %155 = vector.broadcast %cst_69 : f32 to vector<8x64xf32>
    %156 = arith.divf %155, %154 : vector<8x64xf32>
    %cst_70 = arith.constant 1.06140542 : f32
    %157 = vector.broadcast %cst_70 : f32 to vector<8x64xf32>
    %158 = arith.mulf %157, %156 : vector<8x64xf32>
    %cst_71 = arith.constant -1.45315206 : f32
    %159 = vector.broadcast %cst_71 : f32 to vector<8x64xf32>
    %160 = arith.addf %158, %159 : vector<8x64xf32>
    %161 = arith.mulf %160, %156 : vector<8x64xf32>
    %cst_72 = arith.constant 1.42141378 : f32
    %162 = vector.broadcast %cst_72 : f32 to vector<8x64xf32>
    %163 = arith.addf %161, %162 : vector<8x64xf32>
    %164 = arith.mulf %163, %156 : vector<8x64xf32>
    %cst_73 = arith.constant -0.284496725 : f32
    %165 = vector.broadcast %cst_73 : f32 to vector<8x64xf32>
    %166 = arith.addf %164, %165 : vector<8x64xf32>
    %167 = arith.mulf %166, %156 : vector<8x64xf32>
    %cst_74 = arith.constant 0.254829586 : f32
    %168 = vector.broadcast %cst_74 : f32 to vector<8x64xf32>
    %169 = arith.addf %167, %168 : vector<8x64xf32>
    %170 = arith.mulf %169, %156 : vector<8x64xf32>
    %cst_75 = arith.constant 0.000000e+00 : f32
    %171 = vector.broadcast %cst_75 : f32 to vector<8x64xf32>
    %172 = arith.subf %171, %150 : vector<8x64xf32>
    %173 = arith.mulf %172, %150 : vector<8x64xf32>
    %174 = math.exp %173 : vector<8x64xf32>
    %175 = arith.mulf %170, %174 : vector<8x64xf32>
    %cst_76 = arith.constant 1.000000e+00 : f32
    %176 = vector.broadcast %cst_76 : f32 to vector<8x64xf32>
    %177 = arith.subf %176, %175 : vector<8x64xf32>
    %178 = arith.mulf %149, %177 : vector<8x64xf32>
    %cst_77 = arith.constant 1.000000e+00 : f32
    %179 = vector.broadcast %cst_77 : f32 to vector<8x64xf32>
    %180 = arith.addf %179, %178 : vector<8x64xf32>
    %181 = arith.mulf %142, %180 : vector<8x64xf32>
    %c0_78 = arith.constant 0 : index
    %c0_79 = arith.constant 0 : index
    %182 = vector.load %arg11[%c0_78, %c0_79] : memref<64x32xf32, #tpu.memory_space<vmem>>, vector<64x32xf32>
    %cst_80 = arith.constant dense<0.000000e+00> : vector<8x32xf32>
    %183 = tpu.matmul %181, %182, %cst_80 {dimension_numbers = #tpu.dot_dimension_numbers<[1], [0], [0], [1], [0, 0, 1, 1], [], []>} : vector<8x64xf32>, vector<64x32xf32>, vector<8x32xf32> -> vector<8x32xf32>
    %c0_81 = arith.constant 0 : index
    %c0_82 = arith.constant 0 : index
    %184 = vector.load %arg12[%c0_81, %c0_82] : memref<1x32xf32, #tpu.memory_space<vmem>>, vector<1x32xf32>
    %185 = vector.broadcast %184 : vector<1x32xf32> to vector<8x32xf32>
    %186 = arith.addf %183, %185 : vector<8x32xf32>
    %187 = arith.addf %186, %111 : vector<8x32xf32>
    %c0_83 = arith.constant 0 : index
    %c0_84 = arith.constant 0 : index
    %c0_85 = arith.constant 0 : index
    %188 = vector.load %arg13[%c0_83, %c0_84, %c0_85] : memref<1x8x32xf32, #tpu.memory_space<vmem>>, vector<1x8x32xf32>
    %189 = vector.shape_cast %188 : vector<1x8x32xf32> to vector<8x32xf32>
    %190 = vector.shape_cast %187 : vector<8x32xf32> to vector<1x8x32xf32>
    tpu.vector_store %arg13[%c0_83, %c0_84, %c0_85], %190 {strides = array<i32>} : memref<1x8x32xf32, #tpu.memory_space<vmem>>, vector<1x8x32xf32>,
    return
  }
  func.func @transform_0(%arg0: i32) -> (i32, i32, i32) {
    %c0_i32 = arith.constant 0 : i32
    %c0_i32_0 = arith.constant 0 : i32
    %c0_i32_1 = arith.constant 0 : i32
    return %arg0, %c0_i32, %c0_i32_0 : i32, i32, i32
  }
  func.func @transform_1(%arg0: i32) -> (i32, i32) {
    %c0_i32 = arith.constant 0 : i32
    %c0_i32_0 = arith.constant 0 : i32
    %c0_i32_1 = arith.constant 0 : i32
    return %c0_i32, %c0_i32_0 : i32, i32
  }
  func.func @transform_2(%arg0: i32) -> (i32, i32) {
    %c0_i32 = arith.constant 0 : i32
    %c0_i32_0 = arith.constant 0 : i32
    %c0_i32_1 = arith.constant 0 : i32
    return %c0_i32, %c0_i32_0 : i32, i32
  }
  func.func @transform_3(%arg0: i32) -> (i32, i32) {
    %c0_i32 = arith.constant 0 : i32
    %c0_i32_0 = arith.constant 0 : i32
    %c0_i32_1 = arith.constant 0 : i32
    return %c0_i32, %c0_i32_0 : i32, i32
  }
  func.func @transform_4(%arg0: i32) -> (i32, i32) {
    %c0_i32 = arith.constant 0 : i32
    %c0_i32_0 = arith.constant 0 : i32
    %c0_i32_1 = arith.constant 0 : i32
    return %c0_i32, %c0_i32_0 : i32, i32
  }
  func.func @transform_5(%arg0: i32) -> (i32, i32) {
    %c0_i32 = arith.constant 0 : i32
    %c0_i32_0 = arith.constant 0 : i32
    %c0_i32_1 = arith.constant 0 : i32
    return %c0_i32, %c0_i32_0 : i32, i32
  }
  func.func @transform_6(%arg0: i32) -> (i32, i32) {
    %c0_i32 = arith.constant 0 : i32
    %c0_i32_0 = arith.constant 0 : i32
    %c0_i32_1 = arith.constant 0 : i32
    return %c0_i32, %c0_i32_0 : i32, i32
  }
  func.func @transform_7(%arg0: i32) -> (i32, i32) {
    %c0_i32 = arith.constant 0 : i32
    %c0_i32_0 = arith.constant 0 : i32
    %c0_i32_1 = arith.constant 0 : i32
    return %c0_i32, %c0_i32_0 : i32, i32
  }
  func.func @transform_8(%arg0: i32) -> (i32, i32) {
    %c0_i32 = arith.constant 0 : i32
    %c0_i32_0 = arith.constant 0 : i32
    %c0_i32_1 = arith.constant 0 : i32
    return %c0_i32, %c0_i32_0 : i32, i32
  }
  func.func @transform_9(%arg0: i32) -> (i32, i32) {
    %c0_i32 = arith.constant 0 : i32
    %c0_i32_0 = arith.constant 0 : i32
    %c0_i32_1 = arith.constant 0 : i32
    return %c0_i32, %c0_i32_0 : i32, i32
  }
  func.func @transform_10(%arg0: i32) -> (i32, i32) {
    %c0_i32 = arith.constant 0 : i32
    %c0_i32_0 = arith.constant 0 : i32
    %c0_i32_1 = arith.constant 0 : i32
    return %c0_i32, %c0_i32_0 : i32, i32
  }
  func.func @transform_11(%arg0: i32) -> (i32, i32) {
    %c0_i32 = arith.constant 0 : i32
    %c0_i32_0 = arith.constant 0 : i32
    %c0_i32_1 = arith.constant 0 : i32
    return %c0_i32, %c0_i32_0 : i32, i32
  }
  func.func @transform_12(%arg0: i32) -> (i32, i32, i32) {
    %c0_i32 = arith.constant 0 : i32
    %c0_i32_0 = arith.constant 0 : i32
    %c0_i32_1 = arith.constant 0 : i32
    return %arg0, %c0_i32, %c0_i32_0 : i32, i32, i32
  }
  func.func @transform_13(%arg0: i32) -> (i32, i32, i32, i32) {
    %c0_i32 = arith.constant 0 : i32
    %c0_i32_0 = arith.constant 0 : i32
    %c0_i32_1 = arith.constant 0 : i32
    %c0_i32_2 = arith.constant 0 : i32
    return %arg0, %c0_i32, %c0_i32_0, %c0_i32_1 : i32, i32, i32, i32
  }
}

</mosaic_0001>

<llo_original>
// kernel: tpu_custom_call.1
$region0: #{tpu_custom_call.1}
  #allocation0 [shape = 'u32[]', space=smem, size = 0x4, offset = 0x4, fixed_abs, tag = 'smem constant byte address 0x4 - core index']
  #allocation1 [shape = 'u32[144,128]{1,0:T(1,128)}', space=vmem, size = 0x12000, scoped, tag = 'internal scratch']
  %s0 = inlined_call_operand.hbm [shape: f32[2,8,32], index: 0, kind: input, shape index: {}]
  %s1 = inlined_call_operand.vmem [shape: f32[1,32], index: 1, kind: input, shape index: {}]
  %s2 = inlined_call_operand.vmem [shape: f32[1,32], index: 2, kind: input, shape index: {}]
  %s3 = inlined_call_operand.vmem [shape: f32[32,96], index: 3, kind: input, shape index: {}]
  %s4 = inlined_call_operand.vmem [shape: f32[32,32], index: 4, kind: input, shape index: {}]
  %s5 = inlined_call_operand.vmem [shape: f32[1,32], index: 5, kind: input, shape index: {}]
  %s6 = inlined_call_operand.vmem [shape: f32[1,32], index: 6, kind: input, shape index: {}]
  %s7 = inlined_call_operand.vmem [shape: f32[1,32], index: 7, kind: input, shape index: {}]
  %s8 = inlined_call_operand.vmem [shape: f32[32,64], index: 8, kind: input, shape index: {}]
  %s9 = inlined_call_operand.vmem [shape: f32[1,64], index: 9, kind: input, shape index: {}]
  %s10 = inlined_call_operand.vmem [shape: f32[64,32], index: 10, kind: input, shape index: {}]
  %s11 = inlined_call_operand.vmem [shape: f32[1,32], index: 11, kind: input, shape index: {}]
  %s12 = inlined_call_operand.hbm [shape: f32[2,8,32], index: 12, kind: output, shape index: {0}]
  %s13 = inlined_call_operand.hbm [shape: f32[2,4,8,8], index: 13, kind: output, shape index: {1}]
  %14 = xla_tuple %s12, %s13
  %s15 = sld [smem:[#allocation0]]
  $region93: #{tpu_custom_call.1} parent=0
    _
  %s17 = ssub.s32 1, %s15
  %s18 = scalar_select 0, %s17, %s15
  $region1: #{tpu_custom_call.1} parent=0
    #allocation2 [shape = 'u8[8192]{0}', space=vmem, size = 0x2000, scoped, tag = 'input window, operand 0']
    #allocation3 [shape = 's32[2]{0}', space=sflag, size = 0x8, scoped, tag = 'scoped memory for tpu_custom_call.1']
    #allocation4 [shape = 's32[2]{0}', space=sflag, size = 0x8, scoped, tag = 'scoped memory for tpu_custom_call.1']
    #allocation5 [shape = 'u8[8192]{0}', space=vmem, size = 0x2000, scoped, tag = 'output window, operand 0']
    #allocation6 [shape = 'u8[32768]{0}', space=vmem, size = 0x8000, scoped, tag = 'output window, operand 1']
    #allocation7 [shape = 's32[2]{0}', space=sflag, size = 0x8, scoped, tag = 'scoped memory for tpu_custom_call.1']
    %19 = vsyncpa [#allocation3], 0
    %s20 = scalar_lea.sflag [#allocation3], 1
    %21 = vsyncpa %s20, 0
    %22 = vsyncpa [#allocation4], 0
    %s23 = scalar_lea.sflag [#allocation4], 1
    %24 = vsyncpa %s23, 0
    %25 = vsyncpa [#allocation7], 0
    %s26 = scalar_lea.sflag [#allocation7], 1
    %27 = vsyncpa %s26, 0
    loop: start=0, step=1, limit=4
    $region2: #{tpu_custom_call.1} parent=1 // loop_pre_header
      _
    $region3: #{tpu_custom_call.1} parent=1 // loop_header
      %s29 = sphi 0, %s33
      %p30 = scmp.ge.s32.totalorder %s29, 4
      %s39 = sphi 0, %s41
      %s42 = sphi 0, %s39
      %s43 = sphi 0, %s42
      %s59 = sphi 0, %s43
      %s63 = sphi 0, %s63
      %s65 = sphi 0, %s63
      %s66 = sphi 0, %s65
      %s80 = sphi 0, %s66
      %s84 = sphi 0, %s84
      %s86 = sphi 0, %s84
      %s87 = sphi 0, %s86
      %s101 = sphi 0, %s87
      %s105 = sphi 0, %s105
      %s107 = sphi 0, %s105
      %s108 = sphi 0, %s107
      %s122 = sphi 0, %s108
      %s126 = sphi 0, %s126
      %s128 = sphi 0, %s126
      %s129 = sphi 0, %s128
      %s143 = sphi 0, %s129
      %s147 = sphi 0, %s147
      %s149 = sphi 0, %s147
      %s150 = sphi 0, %s149
      %s164 = sphi 0, %s150
      %s168 = sphi 0, %s168
      %s170 = sphi 0, %s168
      %s171 = sphi 0, %s170
      %s185 = sphi 0, %s171
      %s189 = sphi 0, %s189
      %s191 = sphi 0, %s189
      %s192 = sphi 0, %s191
      %s206 = sphi 0, %s192
      %s210 = sphi 0, %s210
      %s212 = sphi 0, %s210
      %s213 = sphi 0, %s212
      %s227 = sphi 0, %s213
      %s231 = sphi 0, %s231
      %s233 = sphi 0, %s231
      %s234 = sphi 0, %s233
      %s248 = sphi 0, %s234
      %s252 = sphi 0, %s252
      %s254 = sphi 0, %s252
      %s255 = sphi 0, %s254
      %s269 = sphi 0, %s255
      %s273 = sphi 0, %s273
      %s275 = sphi 0, %s273
      %s276 = sphi 0, %s275
      %s290 = sphi 0, %s276
      %s296 = sphi 0, %s298
      %s299 = sphi 0, %s296
      %s300 = sphi 0, %s299
      %s316 = sphi 0, %s300
      %s322 = sphi 0, %s324
      %s325 = sphi 0, %s322
      %s326 = sphi 0, %s325
      %s342 = sphi 0, %s326
    $region4: #{tpu_custom_call.1} parent=1 // loop_header_branch
      %32 = sbr.rel (%p30) target = $region8
    $region5: #{tpu_custom_call.1} parent=1 // loop_body
      %s34 = ssub.s32 %s29, 1
      %s35 = ssub.s32 %s29, 2
      %s36 = sadd.s32 %s29, 1
      %s37 = ssub.s32 %s29, %s36
      %p38 = scmp.eq.s32.totalorder %s37, 0
      %s40 = sadd.s32 %s39, 1
      %s41 = scalar_select %p38, %s39, %s40
      %p44 = pneg %p38
      %p45 = scmp.eq.s32.totalorder %s29, 1
      %p46 = por %p44, %p45
      %p47 = scmp.ne.s32.totalorder %s39, %s42
      %p48 = scmp.eq.s32.totalorder %s29, 0
      %p49 = por %p47, %p48
      %p50 = scmp.ne.s32.totalorder %s39, %s42
      %p51 = scmp.eq.s32.totalorder %s34, 1
      %p52 = por %p50, %p51
      %p53 = scmp.ne.s32.totalorder %s42, %s43
      %p54 = scmp.eq.s32.totalorder %s34, 0
      %p55 = por %p53, %p54
      %p56 = scmp.ne.s32.totalorder %s42, %s43
      %p57 = scmp.eq.s32.totalorder %s35, 1
      %p58 = por %p56, %p57
      %p60 = scmp.ne.s32.totalorder %s43, %s59
      %p61 = scmp.eq.s32.totalorder %s35, 0
      %p62 = por %p60, %p61
      %s64 = sadd.s32 %s63, 1
      %p67 = scmp.eq.s32.totalorder %s29, 1
      %p68 = scmp.ne.s32.totalorder %s63, %s65
      %p69 = scmp.eq.s32.totalorder %s29, 0
      %p70 = por %p68, %p69
      %p71 = scmp.ne.s32.totalorder %s63, %s65
      %p72 = scmp.eq.s32.totalorder %s34, 1
      %p73 = por %p71, %p72
      %p74 = scmp.ne.s32.totalorder %s65, %s66
      %p75 = scmp.eq.s32.totalorder %s34, 0
      %p76 = por %p74, %p75
      %p77 = scmp.ne.s32.totalorder %s65, %s66
      %p78 = scmp.eq.s32.totalorder %s35, 1
      %p79 = por %p77, %p78
      %p81 = scmp.ne.s32.totalorder %s66, %s80
      %p82 = scmp.eq.s32.totalorder %s35, 0
      %p83 = por %p81, %p82
      %s85 = sadd.s32 %s84, 1
      %p88 = scmp.eq.s32.totalorder %s29, 1
      %p89 = scmp.ne.s32.totalorder %s84, %s86
      %p90 = scmp.eq.s32.totalorder %s29, 0
      %p91 = por %p89, %p90
      %p92 = scmp.ne.s32.totalorder %s84, %s86
      %p93 = scmp.eq.s32.totalorder %s34, 1
      %p94 = por %p92, %p93
      %p95 = scmp.ne.s32.totalorder %s86, %s87
      %p96 = scmp.eq.s32.totalorder %s34, 0
      %p97 = por %p95, %p96
      %p98 = scmp.ne.s32.totalorder %s86, %s87
      %p99 = scmp.eq.s32.totalorder %s35, 1
      %p100 = por %p98, %p99
      %p102 = scmp.ne.s32.totalorder %s87, %s101
      %p103 = scmp.eq.s32.totalorder %s35, 0
      %p104 = por %p102, %p103
      %s106 = sadd.s32 %s105, 1
      %p109 = scmp.eq.s32.totalorder %s29, 1
      %p110 = scmp.ne.s32.totalorder %s105, %s107
      %p111 = scmp.eq.s32.totalorder %s29, 0
      %p112 = por %p110, %p111
      %p113 = scmp.ne.s32.totalorder %s105, %s107
      %p114 = scmp.eq.s32.totalorder %s34, 1
      %p115 = por %p113, %p114
      %p116 = scmp.ne.s32.totalorder %s107, %s108
      %p117 = scmp.eq.s32.totalorder %s34, 0
      %p118 = por %p116, %p117
      %p119 = scmp.ne.s32.totalorder %s107, %s108
      %p120 = scmp.eq.s32.totalorder %s35, 1
      %p121 = por %p119, %p120
      %p123 = scmp.ne.s32.totalorder %s108, %s122
      %p124 = scmp.eq.s32.totalorder %s35, 0
      %p125 = por %p123, %p124
      %s127 = sadd.s32 %s126, 1
      %p130 = scmp.eq.s32.totalorder %s29, 1
      %p131 = scmp.ne.s32.totalorder %s126, %s128
      %p132 = scmp.eq.s32.totalorder %s29, 0
      %p133 = por %p131, %p132
      %p134 = scmp.ne.s32.totalorder %s126, %s128
      %p135 = scmp.eq.s32.totalorder %s34, 1
      %p136 = por %p134, %p135
      %p137 = scmp.ne.s32.totalorder %s128, %s129
      %p138 = scmp.eq.s32.totalorder %s34, 0
      %p139 = por %p137, %p138
      %p140 = scmp.ne.s32.totalorder %s128, %s129
      %p141 = scmp.eq.s32.totalorder %s35, 1
      %p142 = por %p140, %p141
      %p144 = scmp.ne.s32.totalorder %s129, %s143
      %p145 = scmp.eq.s32.totalorder %s35, 0
      %p146 = por %p144, %p145
      %s148 = sadd.s32 %s147, 1
      %p151 = scmp.eq.s32.totalorder %s29, 1
      %p152 = scmp.ne.s32.totalorder %s147, %s149
      %p153 = scmp.eq.s32.totalorder %s29, 0
      %p154 = por %p152, %p153
      %p155 = scmp.ne.s32.totalorder %s147, %s149
      %p156 = scmp.eq.s32.totalorder %s34, 1
      %p157 = por %p155, %p156
      %p158 = scmp.ne.s32.totalorder %s149, %s150
      %p159 = scmp.eq.s32.totalorder %s34, 0
      %p160 = por %p158, %p159
      %p161 = scmp.ne.s32.totalorder %s149, %s150
      %p162 = scmp.eq.s32.totalorder %s35, 1
      %p163 = por %p161, %p162
      %p165 = scmp.ne.s32.totalorder %s150, %s164
      %p166 = scmp.eq.s32.totalorder %s35, 0
      %p167 = por %p165, %p166
      %s169 = sadd.s32 %s168, 1
      %p172 = scmp.eq.s32.totalorder %s29, 1
      %p173 = scmp.ne.s32.totalorder %s168, %s170
      %p174 = scmp.eq.s32.totalorder %s29, 0
      %p175 = por %p173, %p174
      %p176 = scmp.ne.s32.totalorder %s168, %s170
      %p177 = scmp.eq.s32.totalorder %s34, 1
      %p178 = por %p176, %p177
      %p179 = scmp.ne.s32.totalorder %s170, %s171
      %p180 = scmp.eq.s32.totalorder %s34, 0
      %p181 = por %p179, %p180
      %p182 = scmp.ne.s32.totalorder %s170, %s171
      %p183 = scmp.eq.s32.totalorder %s35, 1
      %p184 = por %p182, %p183
      %p186 = scmp.ne.s32.totalorder %s171, %s185
      %p187 = scmp.eq.s32.totalorder %s35, 0
      %p188 = por %p186, %p187
      %s190 = sadd.s32 %s189, 1
      %p193 = scmp.eq.s32.totalorder %s29, 1
      %p194 = scmp.ne.s32.totalorder %s189, %s191
      %p195 = scmp.eq.s32.totalorder %s29, 0
      %p196 = por %p194, %p195
      %p197 = scmp.ne.s32.totalorder %s189, %s191
      %p198 = scmp.eq.s32.totalorder %s34, 1
      %p199 = por %p197, %p198
      %p200 = scmp.ne.s32.totalorder %s191, %s192
      %p201 = scmp.eq.s32.totalorder %s34, 0
      %p202 = por %p200, %p201
      %p203 = scmp.ne.s32.totalorder %s191, %s192
      %p204 = scmp.eq.s32.totalorder %s35, 1
      %p205 = por %p203, %p204
      %p207 = scmp.ne.s32.totalorder %s192, %s206
      %p208 = scmp.eq.s32.totalorder %s35, 0
      %p209 = por %p207, %p208
      %s211 = sadd.s32 %s210, 1
      %p214 = scmp.eq.s32.totalorder %s29, 1
      %p215 = scmp.ne.s32.totalorder %s210, %s212
      %p216 = scmp.eq.s32.totalorder %s29, 0
      %p217 = por %p215, %p216
      %p218 = scmp.ne.s32.totalorder %s210, %s212
      %p219 = scmp.eq.s32.totalorder %s34, 1
      %p220 = por %p218, %p219
      %p221 = scmp.ne.s32.totalorder %s212, %s213
      %p222 = scmp.eq.s32.totalorder %s34, 0
      %p223 = por %p221, %p222
      %p224 = scmp.ne.s32.totalorder %s212, %s213
      %p225 = scmp.eq.s32.totalorder %s35, 1
      %p226 = por %p224, %p225
      %p228 = scmp.ne.s32.totalorder %s213, %s227
      %p229 = scmp.eq.s32.totalorder %s35, 0
      %p230 = por %p228, %p229
      %s232 = sadd.s32 %s231, 1
      %p235 = scmp.eq.s32.totalorder %s29, 1
      %p236 = scmp.ne.s32.totalorder %s231, %s233
      %p237 = scmp.eq.s32.totalorder %s29, 0
      %p238 = por %p236, %p237
      %p239 = scmp.ne.s32.totalorder %s231, %s233
      %p240 = scmp.eq.s32.totalorder %s34, 1
      %p241 = por %p239, %p240
      %p242 = scmp.ne.s32.totalorder %s233, %s234
      %p243 = scmp.eq.s32.totalorder %s34, 0
      %p244 = por %p242, %p243
      %p245 = scmp.ne.s32.totalorder %s233, %s234
      %p246 = scmp.eq.s32.totalorder %s35, 1
      %p247 = por %p245, %p246
      %p249 = scmp.ne.s32.totalorder %s234, %s248
      %p250 = scmp.eq.s32.totalorder %s35, 0
      %p251 = por %p249, %p250
      %s253 = sadd.s32 %s252, 1
      %p256 = scmp.eq.s32.totalorder %s29, 1
      %p257 = scmp.ne.s32.totalorder %s252, %s254
      %p258 = scmp.eq.s32.totalorder %s29, 0
      %p259 = por %p257, %p258
      %p260 = scmp.ne.s32.totalorder %s252, %s254
      %p261 = scmp.eq.s32.totalorder %s34, 1
      %p262 = por %p260, %p261
      %p263 = scmp.ne.s32.totalorder %s254, %s255
      %p264 = scmp.eq.s32.totalorder %s34, 0
      %p265 = por %p263, %p264
      %p266 = scmp.ne.s32.totalorder %s254, %s255
      %p267 = scmp.eq.s32.totalorder %s35, 1
      %p268 = por %p266, %p267
      %p270 = scmp.ne.s32.totalorder %s255, %s269
      %p271 = scmp.eq.s32.totalorder %s35, 0
      %p272 = por %p270, %p271
      %s274 = sadd.s32 %s273, 1
      %p277 = scmp.eq.s32.totalorder %s29, 1
      %p278 = scmp.ne.s32.totalorder %s273, %s275
      %p279 = scmp.eq.s32.totalorder %s29, 0
      %p280 = por %p278, %p279
      %p281 = scmp.ne.s32.totalorder %s273, %s275
      %p282 = scmp.eq.s32.totalorder %s34, 1
      %p283 = por %p281, %p282
      %p284 = scmp.ne.s32.totalorder %s275, %s276
      %p285 = scmp.eq.s32.totalorder %s34, 0
      %p286 = por %p284, %p285
      %p287 = scmp.ne.s32.totalorder %s275, %s276
      %p288 = scmp.eq.s32.totalorder %s35, 1
      %p289 = por %p287, %p288
      %p291 = scmp.ne.s32.totalorder %s276, %s290
      %p292 = scmp.eq.s32.totalorder %s35, 0
      %p293 = por %p291, %p292
      %s294 = ssub.s32 %s29, %s36
      %p295 = scmp.eq.s32.totalorder %s294, 0
      %s297 = sadd.s32 %s296, 1
      %s298 = scalar_select %p295, %s296, %s297
      %p301 = pneg %p295
      %p302 = scmp.eq.s32.totalorder %s29, 1
      %p303 = por %p301, %p302
      %p304 = scmp.ne.s32.totalorder %s296, %s299
      %p305 = scmp.eq.s32.totalorder %s29, 0
      %p306 = por %p304, %p305
      %p307 = scmp.ne.s32.totalorder %s296, %s299
      %p308 = scmp.eq.s32.totalorder %s34, 1
      %p309 = por %p307, %p308
      %p310 = scmp.ne.s32.totalorder %s299, %s300
      %p311 = scmp.eq.s32.totalorder %s34, 0
      %p312 = por %p310, %p311
      %p313 = scmp.ne.s32.totalorder %s299, %s300
      %p314 = scmp.eq.s32.totalorder %s35, 1
      %p315 = por %p313, %p314
      %p317 = scmp.ne.s32.totalorder %s300, %s316
      %p318 = scmp.eq.s32.totalorder %s35, 0
      %p319 = por %p317, %p318
      %s320 = ssub.s32 %s29, %s36
      %p321 = scmp.eq.s32.totalorder %s320, 0
      %s323 = sadd.s32 %s322, 1
      %s324 = scalar_select %p321, %s322, %s323
      %p327 = pneg %p321
      %p328 = scmp.eq.s32.totalorder %s29, 1
      %p329 = por %p327, %p328
      %p330 = scmp.ne.s32.totalorder %s322, %s325
      %p331 = scmp.eq.s32.totalorder %s29, 0
      %p332 = por %p330, %p331
      %p333 = scmp.ne.s32.totalorder %s322, %s325
      %p334 = scmp.eq.s32.totalorder %s34, 1
      %p335 = por %p333, %p334
      %p336 = scmp.ne.s32.totalorder %s325, %s326
      %p337 = scmp.eq.s32.totalorder %s34, 0
      %p338 = por %p336, %p337
      %p339 = scmp.ne.s32.totalorder %s325, %s326
      %p340 = scmp.eq.s32.totalorder %s35, 1
      %p341 = por %p339, %p340
      %p343 = scmp.ne.s32.totalorder %s326, %s342
      %p344 = scmp.eq.s32.totalorder %s35, 0
      %p345 = por %p343, %p344
      %p346 = scmp.le.s32.totalorder 1, %s29
      %p347 = scmp.lt.s32.totalorder %s29, 3
      %p348 = pnand %p346, %p347
      %p349 = pneg %p348
      // Predicated region
      $region9: #{tpu_custom_call.1} parent=5 // pred_check
        _
      $region10: #{tpu_custom_call.1} parent=5 // pred_check_branch
        %351 = sbr.rel (%p348) target = $region12
      $region11: #{tpu_custom_call.1} parent=5 // pred_region
        %s352 = ssub.s32 %s29, 1
        // Predicated region
        $region13: #{tpu_custom_call.1} parent=11 // pred_check
          %p353 = pneg %p76
        $region14: #{tpu_custom_call.1} parent=11 // pred_check_branch
          %355 = sbr.rel (%p353) target = $region16
        $region15: #{tpu_custom_call.1} parent=11 // pred_region
          _
        $region16: #{tpu_custom_call.1} parent=11 // pred_fallthru
          _
        // Predicated region
        $region17: #{tpu_custom_call.1} parent=11 // pred_check
          %p356 = pneg %p97
        $region18: #{tpu_custom_call.1} parent=11 // pred_check_branch
          %358 = sbr.rel (%p356) target = $region20
        $region19: #{tpu_custom_call.1} parent=11 // pred_region
          _
        $region20: #{tpu_custom_call.1} parent=11 // pred_fallthru
          _
        // Predicated region
        $region21: #{tpu_custom_call.1} parent=11 // pred_check
          %p359 = pneg %p118
        $region22: #{tpu_custom_call.1} parent=11 // pred_check_branch
          %361 = sbr.rel (%p359) target = $region24
        $region23: #{tpu_custom_call.1} parent=11 // pred_region
          _
        $region24: #{tpu_custom_call.1} parent=11 // pred_fallthru
          _
        // Predicated region
        $region25: #{tpu_custom_call.1} parent=11 // pred_check
          %p362 = pneg %p139
        $region26: #{tpu_custom_call.1} parent=11 // pred_check_branch
          %364 = sbr.rel (%p362) target = $region28
        $region27: #{tpu_custom_call.1} parent=11 // pred_region
          _
        $region28: #{tpu_custom_call.1} parent=11 // pred_fallthru
          _
        // Predicated region
        $region29: #{tpu_custom_call.1} parent=11 // pred_check
          %p365 = pneg %p160
        $region30: #{tpu_custom_call.1} parent=11 // pred_check_branch
          %367 = sbr.rel (%p365) target = $region32
        $region31: #{tpu_custom_call.1} parent=11 // pred_region
          _
        $region32: #{tpu_custom_call.1} parent=11 // pred_fallthru
          _
        // Predicated region
        $region33: #{tpu_custom_call.1} parent=11 // pred_check
          %p368 = pneg %p181
        $region34: #{tpu_custom_call.1} parent=11 // pred_check_branch
          %370 = sbr.rel (%p368) target = $region36
        $region35: #{tpu_custom_call.1} parent=11 // pred_region
          _
        $region36: #{tpu_custom_call.1} parent=11 // pred_fallthru
          _
        // Predicated region
        $region37: #{tpu_custom_call.1} parent=11 // pred_check
          %p371 = pneg %p202
        $region38: #{tpu_custom_call.1} parent=11 // pred_check_branch
          %373 = sbr.rel (%p371) target = $region40
        $region39: #{tpu_custom_call.1} parent=11 // pred_region
          _
        $region40: #{tpu_custom_call.1} parent=11 // pred_fallthru
          _
        // Predicated region
        $region41: #{tpu_custom_call.1} parent=11 // pred_check
          %p374 = pneg %p223
        $region42: #{tpu_custom_call.1} parent=11 // pred_check_branch
          %376 = sbr.rel (%p374) target = $region44
        $region43: #{tpu_custom_call.1} parent=11 // pred_region
          _
        $region44: #{tpu_custom_call.1} parent=11 // pred_fallthru
          _
        // Predicated region
        $region45: #{tpu_custom_call.1} parent=11 // pred_check
          %p377 = pneg %p244
        $region46: #{tpu_custom_call.1} parent=11 // pred_check_branch
          %379 = sbr.rel (%p377) target = $region48
        $region47: #{tpu_custom_call.1} parent=11 // pred_region
          _
        $region48: #{tpu_custom_call.1} parent=11 // pred_fallthru
          _
        // Predicated region
        $region49: #{tpu_custom_call.1} parent=11 // pred_check
          %p380 = pneg %p265
        $region50: #{tpu_custom_call.1} parent=11 // pred_check_branch
          %382 = sbr.rel (%p380) target = $region52
        $region51: #{tpu_custom_call.1} parent=11 // pred_region
          _
        $region52: #{tpu_custom_call.1} parent=11 // pred_fallthru
          _
        // Predicated region
        $region53: #{tpu_custom_call.1} parent=11 // pred_check
          %p383 = pneg %p286
        $region54: #{tpu_custom_call.1} parent=11 // pred_check_branch
          %385 = sbr.rel (%p383) target = $region56
        $region55: #{tpu_custom_call.1} parent=11 // pred_region
          _
        $region56: #{tpu_custom_call.1} parent=11 // pred_fallthru
          _
      $region12: #{tpu_custom_call.1} parent=5 // pred_fallthru
        _
      %p386 = scmp.lt.s32.totalorder %s29, 2
      // Predicated region
      $region57: #{tpu_custom_call.1} parent=5 // pred_check
        %p387 = pneg %p386
      $region58: #{tpu_custom_call.1} parent=5 // pred_check_branch
        %389 = sbr.rel (%p387) target = $region60
      $region59: #{tpu_custom_call.1} parent=5 // pred_region
        // Predicated region
        $region61: #{tpu_custom_call.1} parent=59 // pred_check
          %p390 = pneg %p49
        $region62: #{tpu_custom_call.1} parent=59 // pred_check_branch
          %392 = sbr.rel (%p390) target = $region64
        $region63: #{tpu_custom_call.1} parent=59 // pred_region
          %s393 = sand.u32 %s39, 1
          %s394 = scalar_lea.sflag [#allocation3], %s393
          %s395 = sand.u32 %s39, 1
          %s396 = smul.addr %s395, 8
          %s397 = scalar_lea.vmem [#allocation2], %s396
          %s399 = ssub.s32 128, 128
          %400 = vsyncadd %s394, %s399
          %s401 = smul.addr %s29, 128
          %s402 = scalar_lea.hbm %s0, %s401
          %s404 = sshll.u32 %s397, 4
          %s405 = int_to_ptr.vmem [resolvable:$true] %s404
          %407 = dma.hbm_to_vmem [thread:$0]  %s402, 128, %s405, %s394
        $region64: #{tpu_custom_call.1} parent=59 // pred_fallthru
          _
      $region60: #{tpu_custom_call.1} parent=5 // pred_fallthru
        _
      %p408 = scmp.le.s32.totalorder 1, %s29
      %p409 = scmp.lt.s32.totalorder %s29, 3
      %p410 = pnand %p408, %p409
      %p411 = pneg %p410
      // Predicated region
      $region65: #{tpu_custom_call.1} parent=5 // pred_check
        _
      $region66: #{tpu_custom_call.1} parent=5 // pred_check_branch
        %413 = sbr.rel (%p410) target = $region68
      $region67: #{tpu_custom_call.1} parent=5 // pred_region
        %s414 = ssub.s32 %s29, 1
        %s415 = sand.u32 %s42, 1
        %s416 = scalar_lea.sflag [#allocation3], %s415
        %s417 = sand.u32 %s42, 1
        %s418 = smul.addr %s417, 8
        %s419 = scalar_lea.vmem [#allocation2], %s418
        // Predicated region
        $region69: #{tpu_custom_call.1} parent=67 // pred_check
          %p420 = pneg %p55
        $region70: #{tpu_custom_call.1} parent=67 // pred_check_branch
          %422 = sbr.rel (%p420) target = $region72
        $region71: #{tpu_custom_call.1} parent=67 // pred_region
          %423 = dma.done %s416, 128
        $region72: #{tpu_custom_call.1} parent=67 // pred_fallthru
          _
        %s424 = sand.u32 %s42, 1
        %s425 = scalar_lea.sflag [#allocation3], %s424
        %s426 = sand.u32 %s42, 1
        %s427 = smul.addr %s426, 8
        %s428 = scalar_lea.vmem [#allocation2], %s427
        %p429 = pneg %p55
        %p430 = pneg %p52
        %p431 = pneg %p76
        %p432 = pneg %p73
        %p433 = pneg %p97
        %p434 = pneg %p94
        %p435 = pneg %p118
        %p436 = pneg %p115
        %p437 = pneg %p139
        %p438 = pneg %p136
        %p439 = pneg %p160
        %p440 = pneg %p157
        %p441 = pneg %p181
        %p442 = pneg %p178
        %p443 = pneg %p202
        %p444 = pneg %p199
        %p445 = pneg %p223
        %p446 = pneg %p220
        %p447 = pneg %p244
        %p448 = pneg %p241
        %p449 = pneg %p265
        %p450 = pneg %p262
        %p451 = pneg %p286
        %p452 = pneg %p283
        %p453 = pneg %p312
        %p454 = pneg %p309
        %s455 = sand.u32 %s299, 1
        %s456 = scalar_lea.sflag [#allocation4], %s455
        %s457 = sand.u32 %s299, 1
        %s458 = smul.addr %s457, 8
        %s459 = scalar_lea.vmem [#allocation5], %s458
        %p460 = pneg %p338
        %p461 = pneg %p335
        %s462 = sand.u32 %s325, 1
        %s463 = scalar_lea.sflag [#allocation7], %s462
        %s464 = sand.u32 %s325, 1
        %s465 = smul.addr %s464, 32
        %s466 = scalar_lea.vmem [#allocation6], %s465
        %v467 = vld [vmem:[%s419] sm:$0xff]
        %v468 = vld [vmem:[%s1] sm:$0x1]
        %v469 = vld [vmem:[%s2] sm:$0x1]
        %vm470 = vcmask 261120
        %v471 = vsel %vm470, %v467, 0.0
        %472 = vadd.xlane.f32.xlu0 %v471
        %v473 = vpop.xlane.xlu0 %472
        %v474 = vrcp.pop 32.0
        %v475 = vmul.f32 %v473, %v474
        %v476 = vsub.f32 %v467, %v475
        %v477 = vmul.f32 %v476, %v476
        %v478 = vsel %vm470, %v477, 0.0
        %479 = vadd.xlane.f32.xlu0 %v478
        %v480 = vpop.xlane.xlu0 %479
        %v481 = vmul.f32 %v480, %v474
        %v482 = vadd.f32 %v481, 1e-05
        %v483 = vrsqrt.pop %v482
        %v484 = vmul.f32 %v476, %v483
        %v486 = vlaneseq
        %v487 = vshrl.u32 %v486, 7
        %v488 = vsub.s32 0, %v487
        %v489 = vrot.slane %v468, %v488
        %v491 = vmul.f32 %v484, %v489
        %v493 = vlaneseq
        %v494 = vshrl.u32 %v493, 7
        %v495 = vsub.s32 0, %v494
        %v496 = vrot.slane %v469, %v495
        %v498 = vadd.f32 %v491, %v496
        %v499 = vld [vmem:[%s3] sm:$0xff]
        %v500 = vld [vmem:[%s3 + $0x8] sm:$0xff]
        %v501 = vld [vmem:[%s3 + $0x10] sm:$0xff]
        %v502 = vld [vmem:[%s3 + $0x18] sm:$0xff]
        %v504 = vsel %vm470, %v498, 0
        %506 = vmatprep.subr.mxu0 0.0
        %507 = vmatpush1.msra.mxu0 0.0
        %508 = vmatprep.subr.mxu0 0.0
        %509 = vmatpush1.msra.mxu0 0.0
        %510 = vmatprep.subr.mxu0 0.0
        %511 = vmatpush1.msra.mxu0 0.0
        %512 = vmatprep.subr.mxu0 0.0
        %513 = vmatpush1.msra.mxu0 0.0
        %514 = vmatprep.subr.mxu0 0.0
        %515 = vmatpush1.msra.mxu0 0.0
        %516 = vmatprep.subr.mxu0 0.0
        %517 = vmatpush1.msra.mxu0 0.0
        %518 = vmatprep.subr.mxu0 0.0
        %519 = vmatpush1.msra.mxu0 0.0
        %520 = vmatprep.subr.mxu0 0.0
        %521 = vmatpush1.msra.mxu0 0.0
        %522 = vmatprep.subr.mxu0 0.0
        %523 = vmatpush1.msra.mxu0 0.0
        %524 = vmatprep.subr.mxu0 0.0
        %525 = vmatpush1.msra.mxu0 0.0
        %526 = vmatprep.subr.mxu0 0.0
        %527 = vmatpush1.msra.mxu0 0.0
        %528 = vmatprep.subr.mxu0 0.0
        %529 = vmatpush1.msra.mxu0 0.0
        %530 = vmatprep.subr.mxu0 0.0
        %531 = vmatpush1.msra.mxu0 %v502
        %532 = vmatprep.subr.mxu0 0.0
        %533 = vmatpush1.msra.mxu0 %v501
        %534 = vmatprep.subr.mxu0 0.0
        %535 = vmatpush1.msra.mxu0 %v500
        %536 = vmatprep.subr.mxu0 0.0
        %537 = vmatpush1.msra.mxu0 %v499
        %538 = vmatprep.subr.mxu0 0.0
        %539 = vmatpush2.msra.mxu0 0.0
        %540 = vmatprep.subr.mxu0 0.0
        %541 = vmatpush2.msra.mxu0 0.0
        %542 = vmatprep.subr.mxu0 0.0
        %543 = vmatpush2.msra.mxu0 0.0
        %544 = vmatprep.subr.mxu0 0.0
        %545 = vmatpush2.msra.mxu0 0.0
        %546 = vmatprep.subr.mxu0 0.0
        %547 = vmatpush2.msra.mxu0 0.0
        %548 = vmatprep.subr.mxu0 0.0
        %549 = vmatpush2.msra.mxu0 0.0
        %550 = vmatprep.subr.mxu0 0.0
        %551 = vmatpush2.msra.mxu0 0.0
        %552 = vmatprep.subr.mxu0 0.0
        %553 = vmatpush2.msra.mxu0 0.0
        %554 = vmatprep.subr.mxu0 0.0
        %555 = vmatpush2.msra.mxu0 0.0
        %556 = vmatprep.subr.mxu0 0.0
        %557 = vmatpush2.msra.mxu0 0.0
        %558 = vmatprep.subr.mxu0 0.0
        %559 = vmatpush2.msra.mxu0 0.0
        %560 = vmatprep.subr.mxu0 0.0
        %561 = vmatpush2.msra.mxu0 0.0
        %562 = vmatprep.subr.mxu0 0.0
        %563 = vmatpush2.msra.mxu0 0.0
        %564 = vmatprep.subr.mxu0 0.0
        %565 = vmatpush2.msra.mxu0 0.0
        %566 = vmatprep.subr.mxu0 0.0
        %567 = vmatpush2.msra.mxu0 0.0
        %568 = vmatprep.subr.mxu0 0.0
        %569 = vmatpush2.msra.mxu0 0.0
        %570 = vmatprep.mubr.f32.mxu0 0.0
        %571 = vmatmul.mubr.f32.gmra.mxu0 %v504
        %v572 = vpop.f32.mrf.mxu0
        %v573 = vadd.f32 0.0, %v572
        %v574 = vpop.f32.mrf.mxu0
        %575 = vdwg.mxu0
        %v576 = vmul.f32 %v573, 0.35355338
        %578 = vrot.lane.b32.xlu0 %v573, 96
        %v579 = vpop.permute.xlu0 %578
        %vm580 = vcmask 64512
        %v582 = vsel %vm580, %v576, 0
        %v584 = vsel %vm580, %v579, 0
        %586 = vmatprep.subr.mxu0 0.0
        %587 = vmatpush1.xpose.msra.mxu0 0.0
        %588 = vmatprep.subr.mxu0 0.0
        %589 = vmatpush1.xpose.msra.mxu0 0.0
        %590 = vmatprep.subr.mxu0 0.0
        %591 = vmatpush1.xpose.msra.mxu0 0.0
        %592 = vmatprep.subr.mxu0 0.0
        %593 = vmatpush1.xpose.msra.mxu0 0.0
        %594 = vmatprep.subr.mxu0 0.0
        %595 = vmatpush1.xpose.msra.mxu0 0.0
        %596 = vmatprep.subr.mxu0 0.0
        %597 = vmatpush1.xpose.msra.mxu0 0.0
        %598 = vmatprep.subr.mxu0 0.0
        %599 = vmatpush1.xpose.msra.mxu0 0.0
        %600 = vmatprep.subr.mxu0 0.0
        %601 = vmatpush1.xpose.msra.mxu0 0.0
        %602 = vmatprep.subr.mxu0 0.0
        %603 = vmatpush1.xpose.msra.mxu0 0.0
        %604 = vmatprep.subr.mxu0 0.0
        %605 = vmatpush1.xpose.msra.mxu0 0.0
        %606 = vmatprep.subr.mxu0 0.0
        %607 = vmatpush1.xpose.msra.mxu0 0.0
        %608 = vmatprep.subr.mxu0 0.0
        %609 = vmatpush1.xpose.msra.mxu0 0.0
        %610 = vmatprep.subr.mxu0 0.0
        %611 = vmatpush1.xpose.msra.mxu0 0.0
        %612 = vmatprep.subr.mxu0 0.0
        %613 = vmatpush1.xpose.msra.mxu0 0.0
        %614 = vmatprep.subr.mxu0 0.0
        %615 = vmatpush1.xpose.msra.mxu0 0.0
        %616 = vmatprep.subr.mxu0 0.0
        %617 = vmatpush1.xpose.msra.mxu0 %v584
        %618 = vmatprep.subr.mxu0 0.0
        %619 = vmatpush2.xpose.msra.mxu0 0.0
        %620 = vmatprep.subr.mxu0 0.0
        %621 = vmatpush2.xpose.msra.mxu0 0.0
        %622 = vmatprep.subr.mxu0 0.0
        %623 = vmatpush2.xpose.msra.mxu0 0.0
        %624 = vmatprep.subr.mxu0 0.0
        %625 = vmatpush2.xpose.msra.mxu0 0.0
        %626 = vmatprep.subr.mxu0 0.0
        %627 = vmatpush2.xpose.msra.mxu0 0.0
        %628 = vmatprep.subr.mxu0 0.0
        %629 = vmatpush2.xpose.msra.mxu0 0.0
        %630 = vmatprep.subr.mxu0 0.0
        %631 = vmatpush2.xpose.msra.mxu0 0.0
        %632 = vmatprep.subr.mxu0 0.0
        %633 = vmatpush2.xpose.msra.mxu0 0.0
        %634 = vmatprep.subr.mxu0 0.0
        %635 = vmatpush2.xpose.msra.mxu0 0.0
        %636 = vmatprep.subr.mxu0 0.0
        %637 = vmatpush2.xpose.msra.mxu0 0.0
        %638 = vmatprep.subr.mxu0 0.0
        %639 = vmatpush2.xpose.msra.mxu0 0.0
        %640 = vmatprep.subr.mxu0 0.0
        %641 = vmatpush2.xpose.msra.mxu0 0.0
        %642 = vmatprep.subr.mxu0 0.0
        %643 = vmatpush2.xpose.msra.mxu0 0.0
        %644 = vmatprep.subr.mxu0 0.0
        %645 = vmatpush2.xpose.msra.mxu0 0.0
        %646 = vmatprep.subr.mxu0 0.0
        %647 = vmatpush2.xpose.msra.mxu0 0.0
        %648 = vmatprep.subr.mxu0 0.0
        %649 = vmatpush2.xpose.msra.mxu0 0.0
        %650 = vmatprep.mubr.f32.mxu0 0.0
        %651 = vmatmul.mubr.f32.gmra.mxu0 %v582
        %v652 = vpop.f32.mrf.mxu0
        %v653 = vadd.f32 0.0, %v652
        %v654 = vpop.f32.mrf.mxu0
        %655 = vdwg.mxu0
        %v656 = vsel %vm580, %v653, -inf
        %657 = vmax.xlane.f32.xlu0 %v656
        %v658 = vpop.xlane.xlu0 %657
        %v659 = vsub.f32 %v653, %v658
        %v660 = vmul.f32 %v659, 1.442695
        %v661 = vpow.pop %v660
        %v662 = vsel %vm580, %v661, 0.0
        %663 = vadd.xlane.f32.xlu0 %v662
        %v664 = vpop.xlane.xlu0 %663
        %v665 = vrcp.pop %v664
        %v666 = vmul.f32 %v661, %v665
        %667 = vst.msk [vmem:[%s466] sm:$0xff] %vm580, %v666
        %668 = vrot.lane.b32.xlu0 %v573, 64
        %v669 = vpop.permute.xlu0 %668
        %v672 = vsel %vm580, %v666, 0
        %674 = vmatprep.subr.mxu0 0.0
        %675 = vmatpush1.msra.mxu0 0.0
        %676 = vmatprep.subr.mxu0 0.0
        %677 = vmatpush1.msra.mxu0 0.0
        %678 = vmatprep.subr.mxu0 0.0
        %679 = vmatpush1.msra.mxu0 0.0
        %680 = vmatprep.subr.mxu0 0.0
        %681 = vmatpush1.msra.mxu0 0.0
        %682 = vmatprep.subr.mxu0 0.0
        %683 = vmatpush1.msra.mxu0 0.0
        %684 = vmatprep.subr.mxu0 0.0
        %685 = vmatpush1.msra.mxu0 0.0
        %686 = vmatprep.subr.mxu0 0.0
        %687 = vmatpush1.msra.mxu0 0.0
        %688 = vmatprep.subr.mxu0 0.0
        %689 = vmatpush1.msra.mxu0 0.0
        %690 = vmatprep.subr.mxu0 0.0
        %691 = vmatpush1.msra.mxu0 0.0
        %692 = vmatprep.subr.mxu0 0.0
        %693 = vmatpush1.msra.mxu0 0.0
        %694 = vmatprep.subr.mxu0 0.0
        %695 = vmatpush1.msra.mxu0 0.0
        %696 = vmatprep.subr.mxu0 0.0
        %697 = vmatpush1.msra.mxu0 0.0
        %698 = vmatprep.subr.mxu0 0.0
        %699 = vmatpush1.msra.mxu0 0.0
        %700 = vmatprep.subr.mxu0 0.0
        %701 = vmatpush1.msra.mxu0 0.0
        %702 = vmatprep.subr.mxu0 0.0
        %703 = vmatpush1.msra.mxu0 0.0
        %704 = vmatprep.subr.mxu0 0.0
        %705 = vmatpush1.msra.mxu0 %v669
        %706 = vmatprep.subr.mxu0 0.0
        %707 = vmatpush2.msra.mxu0 0.0
        %708 = vmatprep.subr.mxu0 0.0
        %709 = vmatpush2.msra.mxu0 0.0
        %710 = vmatprep.subr.mxu0 0.0
        %711 = vmatpush2.msra.mxu0 0.0
        %712 = vmatprep.subr.mxu0 0.0
        %713 = vmatpush2.msra.mxu0 0.0
        %714 = vmatprep.subr.mxu0 0.0
        %715 = vmatpush2.msra.mxu0 0.0
        %716 = vmatprep.subr.mxu0 0.0
        %717 = vmatpush2.msra.mxu0 0.0
        %718 = vmatprep.subr.mxu0 0.0
        %719 = vmatpush2.msra.mxu0 0.0
        %720 = vmatprep.subr.mxu0 0.0
        %721 = vmatpush2.msra.mxu0 0.0
        %722 = vmatprep.subr.mxu0 0.0
        %723 = vmatpush2.msra.mxu0 0.0
        %724 = vmatprep.subr.mxu0 0.0
        %725 = vmatpush2.msra.mxu0 0.0
        %726 = vmatprep.subr.mxu0 0.0
        %727 = vmatpush2.msra.mxu0 0.0
        %728 = vmatprep.subr.mxu0 0.0
        %729 = vmatpush2.msra.mxu0 0.0
        %730 = vmatprep.subr.mxu0 0.0
        %731 = vmatpush2.msra.mxu0 0.0
        %732 = vmatprep.subr.mxu0 0.0
        %733 = vmatpush2.msra.mxu0 0.0
        %734 = vmatprep.subr.mxu0 0.0
        %735 = vmatpush2.msra.mxu0 0.0
        %736 = vmatprep.subr.mxu0 0.0
        %737 = vmatpush2.msra.mxu0 0.0
        %738 = vmatprep.mubr.f32.mxu0 0.0
        %739 = vmatmul.mubr.f32.gmra.mxu0 %v672
        %v740 = vpop.f32.mrf.mxu0
        %v741 = vadd.f32 0.0, %v740
        %v742 = vpop.f32.mrf.mxu0
        %743 = vdwg.mxu0
        %744 = vrot.lane.b32.xlu0 %v576, 120
        %v745 = vpop.permute.xlu0 %744
        %746 = vrot.lane.b32.xlu0 %v573, 88
        %v747 = vpop.permute.xlu0 %746
        %v748 = vsel %vm580, %v745, 0
        %v750 = vsel %vm580, %v747, 0
        %752 = vmatprep.subr.mxu0 0.0
        %753 = vmatpush1.xpose.msra.mxu0 0.0
        %754 = vmatprep.subr.mxu0 0.0
        %755 = vmatpush1.xpose.msra.mxu0 0.0
        %756 = vmatprep.subr.mxu0 0.0
        %757 = vmatpush1.xpose.msra.mxu0 0.0
        %758 = vmatprep.subr.mxu0 0.0
        %759 = vmatpush1.xpose.msra.mxu0 0.0
        %760 = vmatprep.subr.mxu0 0.0
        %761 = vmatpush1.xpose.msra.mxu0 0.0
        %762 = vmatprep.subr.mxu0 0.0
        %763 = vmatpush1.xpose.msra.mxu0 0.0
        %764 = vmatprep.subr.mxu0 0.0
        %765 = vmatpush1.xpose.msra.mxu0 0.0
        %766 = vmatprep.subr.mxu0 0.0
        %767 = vmatpush1.xpose.msra.mxu0 0.0
        %768 = vmatprep.subr.mxu0 0.0
        %769 = vmatpush1.xpose.msra.mxu0 0.0
        %770 = vmatprep.subr.mxu0 0.0
        %771 = vmatpush1.xpose.msra.mxu0 0.0
        %772 = vmatprep.subr.mxu0 0.0
        %773 = vmatpush1.xpose.msra.mxu0 0.0
        %774 = vmatprep.subr.mxu0 0.0
        %775 = vmatpush1.xpose.msra.mxu0 0.0
        %776 = vmatprep.subr.mxu0 0.0
        %777 = vmatpush1.xpose.msra.mxu0 0.0
        %778 = vmatprep.subr.mxu0 0.0
        %779 = vmatpush1.xpose.msra.mxu0 0.0
        %780 = vmatprep.subr.mxu0 0.0
        %781 = vmatpush1.xpose.msra.mxu0 0.0
        %782 = vmatprep.subr.mxu0 0.0
        %783 = vmatpush1.xpose.msra.mxu0 %v750
        %784 = vmatprep.subr.mxu0 0.0
        %785 = vmatpush2.xpose.msra.mxu0 0.0
        %786 = vmatprep.subr.mxu0 0.0
        %787 = vmatpush2.xpose.msra.mxu0 0.0
        %788 = vmatprep.subr.mxu0 0.0
        %789 = vmatpush2.xpose.msra.mxu0 0.0
        %790 = vmatprep.subr.mxu0 0.0
        %791 = vmatpush2.xpose.msra.mxu0 0.0
        %792 = vmatprep.subr.mxu0 0.0
        %793 = vmatpush2.xpose.msra.mxu0 0.0
        %794 = vmatprep.subr.mxu0 0.0
        %795 = vmatpush2.xpose.msra.mxu0 0.0
        %796 = vmatprep.subr.mxu0 0.0
        %797 = vmatpush2.xpose.msra.mxu0 0.0
        %798 = vmatprep.subr.mxu0 0.0
        %799 = vmatpush2.xpose.msra.mxu0 0.0
        %800 = vmatprep.subr.mxu0 0.0
        %801 = vmatpush2.xpose.msra.mxu0 0.0
        %802 = vmatprep.subr.mxu0 0.0
        %803 = vmatpush2.xpose.msra.mxu0 0.0
        %804 = vmatprep.subr.mxu0 0.0
        %805 = vmatpush2.xpose.msra.mxu0 0.0
        %806 = vmatprep.subr.mxu0 0.0
        %807 = vmatpush2.xpose.msra.mxu0 0.0
        %808 = vmatprep.subr.mxu0 0.0
        %809 = vmatpush2.xpose.msra.mxu0 0.0
        %810 = vmatprep.subr.mxu0 0.0
        %811 = vmatpush2.xpose.msra.mxu0 0.0
        %812 = vmatprep.subr.mxu0 0.0
        %813 = vmatpush2.xpose.msra.mxu0 0.0
        %814 = vmatprep.subr.mxu0 0.0
        %815 = vmatpush2.xpose.msra.mxu0 0.0
        %816 = vmatprep.mubr.f32.mxu0 0.0
        %817 = vmatmul.mubr.f32.gmra.mxu0 %v748
        %v818 = vpop.f32.mrf.mxu0
        %v819 = vadd.f32 0.0, %v818
        %v820 = vpop.f32.mrf.mxu0
        %821 = vdwg.mxu0
        %v822 = vsel %vm580, %v819, -inf
        %823 = vmax.xlane.f32.xlu0 %v822
        %v824 = vpop.xlane.xlu0 %823
        %v825 = vsub.f32 %v819, %v824
        %v826 = vmul.f32 %v825, 1.442695
        %v827 = vpow.pop %v826
        %v828 = vsel %vm580, %v827, 0.0
        %829 = vadd.xlane.f32.xlu0 %v828
        %v830 = vpop.xlane.xlu0 %829
        %v831 = vrcp.pop %v830
        %v832 = vmul.f32 %v827, %v831
        %s833 = scalar_lea.vmem %s466, 8 [#allocation6]
        %834 = vst.msk [vmem:[%s833] sm:$0xff] %vm580, %v832
        %835 = vrot.lane.b32.xlu0 %v573, 56
        %v836 = vpop.permute.xlu0 %835
        %v839 = vsel %vm580, %v832, 0
        %841 = vmatprep.subr.mxu0 0.0
        %842 = vmatpush1.msra.mxu0 0.0
        %843 = vmatprep.subr.mxu0 0.0
        %844 = vmatpush1.msra.mxu0 0.0
        %845 = vmatprep.subr.mxu0 0.0
        %846 = vmatpush1.msra.mxu0 0.0
        %847 = vmatprep.subr.mxu0 0.0
        %848 = vmatpush1.msra.mxu0 0.0
        %849 = vmatprep.subr.mxu0 0.0
        %850 = vmatpush1.msra.mxu0 0.0
        %851 = vmatprep.subr.mxu0 0.0
        %852 = vmatpush1.msra.mxu0 0.0
        %853 = vmatprep.subr.mxu0 0.0
        %854 = vmatpush1.msra.mxu0 0.0
        %855 = vmatprep.subr.mxu0 0.0
        %856 = vmatpush1.msra.mxu0 0.0
        %857 = vmatprep.subr.mxu0 0.0
        %858 = vmatpush1.msra.mxu0 0.0
        %859 = vmatprep.subr.mxu0 0.0
        %860 = vmatpush1.msra.mxu0 0.0
        %861 = vmatprep.subr.mxu0 0.0
        %862 = vmatpush1.msra.mxu0 0.0
        %863 = vmatprep.subr.mxu0 0.0
        %864 = vmatpush1.msra.mxu0 0.0
        %865 = vmatprep.subr.mxu0 0.0
        %866 = vmatpush1.msra.mxu0 0.0
        %867 = vmatprep.subr.mxu0 0.0
        %868 = vmatpush1.msra.mxu0 0.0
        %869 = vmatprep.subr.mxu0 0.0
        %870 = vmatpush1.msra.mxu0 0.0
        %871 = vmatprep.subr.mxu0 0.0
        %872 = vmatpush1.msra.mxu0 %v836
        %873 = vmatprep.subr.mxu0 0.0
        %874 = vmatpush2.msra.mxu0 0.0
        %875 = vmatprep.subr.mxu0 0.0
        %876 = vmatpush2.msra.mxu0 0.0
        %877 = vmatprep.subr.mxu0 0.0
        %878 = vmatpush2.msra.mxu0 0.0
        %879 = vmatprep.subr.mxu0 0.0
        %880 = vmatpush2.msra.mxu0 0.0
        %881 = vmatprep.subr.mxu0 0.0
        %882 = vmatpush2.msra.mxu0 0.0
        %883 = vmatprep.subr.mxu0 0.0
        %884 = vmatpush2.msra.mxu0 0.0
        %885 = vmatprep.subr.mxu0 0.0
        %886 = vmatpush2.msra.mxu0 0.0
        %887 = vmatprep.subr.mxu0 0.0
        %888 = vmatpush2.msra.mxu0 0.0
        %889 = vmatprep.subr.mxu0 0.0
        %890 = vmatpush2.msra.mxu0 0.0
        %891 = vmatprep.subr.mxu0 0.0
        %892 = vmatpush2.msra.mxu0 0.0
        %893 = vmatprep.subr.mxu0 0.0
        %894 = vmatpush2.msra.mxu0 0.0
        %895 = vmatprep.subr.mxu0 0.0
        %896 = vmatpush2.msra.mxu0 0.0
        %897 = vmatprep.subr.mxu0 0.0
        %898 = vmatpush2.msra.mxu0 0.0
        %899 = vmatprep.subr.mxu0 0.0
        %900 = vmatpush2.msra.mxu0 0.0
        %901 = vmatprep.subr.mxu0 0.0
        %902 = vmatpush2.msra.mxu0 0.0
        %903 = vmatprep.subr.mxu0 0.0
        %904 = vmatpush2.msra.mxu0 0.0
        %905 = vmatprep.mubr.f32.mxu0 0.0
        %906 = vmatmul.mubr.f32.gmra.mxu0 %v839
        %v907 = vpop.f32.mrf.mxu0
        %v908 = vadd.f32 0.0, %v907
        %v909 = vpop.f32.mrf.mxu0
        %910 = vdwg.mxu0
        %911 = vrot.lane.b32.xlu0 %v576, 112
        %v912 = vpop.permute.xlu0 %911
        %913 = vrot.lane.b32.xlu0 %v573, 80
        %v914 = vpop.permute.xlu0 %913
        %v915 = vsel %vm580, %v912, 0
        %v917 = vsel %vm580, %v914, 0
        %919 = vmatprep.subr.mxu0 0.0
        %920 = vmatpush1.xpose.msra.mxu0 0.0
        %921 = vmatprep.subr.mxu0 0.0
        %922 = vmatpush1.xpose.msra.mxu0 0.0
        %923 = vmatprep.subr.mxu0 0.0
        %924 = vmatpush1.xpose.msra.mxu0 0.0
        %925 = vmatprep.subr.mxu0 0.0
        %926 = vmatpush1.xpose.msra.mxu0 0.0
        %927 = vmatprep.subr.mxu0 0.0
        %928 = vmatpush1.xpose.msra.mxu0 0.0
        %929 = vmatprep.subr.mxu0 0.0
        %930 = vmatpush1.xpose.msra.mxu0 0.0
        %931 = vmatprep.subr.mxu0 0.0
        %932 = vmatpush1.xpose.msra.mxu0 0.0
        %933 = vmatprep.subr.mxu0 0.0
        %934 = vmatpush1.xpose.msra.mxu0 0.0
        %935 = vmatprep.subr.mxu0 0.0
        %936 = vmatpush1.xpose.msra.mxu0 0.0
        %937 = vmatprep.subr.mxu0 0.0
        %938 = vmatpush1.xpose.msra.mxu0 0.0
        %939 = vmatprep.subr.mxu0 0.0
        %940 = vmatpush1.xpose.msra.mxu0 0.0
        %941 = vmatprep.subr.mxu0 0.0
        %942 = vmatpush1.xpose.msra.mxu0 0.0
        %943 = vmatprep.subr.mxu0 0.0
        %944 = vmatpush1.xpose.msra.mxu0 0.0
        %945 = vmatprep.subr.mxu0 0.0
        %946 = vmatpush1.xpose.msra.mxu0 0.0
        %947 = vmatprep.subr.mxu0 0.0
        %948 = vmatpush1.xpose.msra.mxu0 0.0
        %949 = vmatprep.subr.mxu0 0.0
        %950 = vmatpush1.xpose.msra.mxu0 %v917
        %951 = vmatprep.subr.mxu0 0.0
        %952 = vmatpush2.xpose.msra.mxu0 0.0
        %953 = vmatprep.subr.mxu0 0.0
        %954 = vmatpush2.xpose.msra.mxu0 0.0
        %955 = vmatprep.subr.mxu0 0.0
        %956 = vmatpush2.xpose.msra.mxu0 0.0
        %957 = vmatprep.subr.mxu0 0.0
        %958 = vmatpush2.xpose.msra.mxu0 0.0
        %959 = vmatprep.subr.mxu0 0.0
        %960 = vmatpush2.xpose.msra.mxu0 0.0
        %961 = vmatprep.subr.mxu0 0.0
        %962 = vmatpush2.xpose.msra.mxu0 0.0
        %963 = vmatprep.subr.mxu0 0.0
        %964 = vmatpush2.xpose.msra.mxu0 0.0
        %965 = vmatprep.subr.mxu0 0.0
        %966 = vmatpush2.xpose.msra.mxu0 0.0
        %967 = vmatprep.subr.mxu0 0.0
        %968 = vmatpush2.xpose.msra.mxu0 0.0
        %969 = vmatprep.subr.mxu0 0.0
        %970 = vmatpush2.xpose.msra.mxu0 0.0
        %971 = vmatprep.subr.mxu0 0.0
        %972 = vmatpush2.xpose.msra.mxu0 0.0
        %973 = vmatprep.subr.mxu0 0.0
        %974 = vmatpush2.xpose.msra.mxu0 0.0
        %975 = vmatprep.subr.mxu0 0.0
        %976 = vmatpush2.xpose.msra.mxu0 0.0
        %977 = vmatprep.subr.mxu0 0.0
        %978 = vmatpush2.xpose.msra.mxu0 0.0
        %979 = vmatprep.subr.mxu0 0.0
        %980 = vmatpush2.xpose.msra.mxu0 0.0
        %981 = vmatprep.subr.mxu0 0.0
        %982 = vmatpush2.xpose.msra.mxu0 0.0
        %983 = vmatprep.mubr.f32.mxu0 0.0
        %984 = vmatmul.mubr.f32.gmra.mxu0 %v915
        %v985 = vpop.f32.mrf.mxu0
        %v986 = vadd.f32 0.0, %v985
        %v987 = vpop.f32.mrf.mxu0
        %988 = vdwg.mxu0
        %v989 = vsel %vm580, %v986, -inf
        %990 = vmax.xlane.f32.xlu0 %v989
        %v991 = vpop.xlane.xlu0 %990
        %v992 = vsub.f32 %v986, %v991
        %v993 = vmul.f32 %v992, 1.442695
        %v994 = vpow.pop %v993
        %v995 = vsel %vm580, %v994, 0.0
        %996 = vadd.xlane.f32.xlu0 %v995
        %v997 = vpop.xlane.xlu0 %996
        %v998 = vrcp.pop %v997
        %v999 = vmul.f32 %v994, %v998
        %s1000 = scalar_lea.vmem %s466, 16 [#allocation6]
        %1001 = vst.msk [vmem:[%s1000] sm:$0xff] %vm580, %v999
        %1002 = vrot.lane.b32.xlu0 %v573, 48
        %v1003 = vpop.permute.xlu0 %1002
        %v1006 = vsel %vm580, %v999, 0
        %1008 = vmatprep.subr.mxu0 0.0
        %1009 = vmatpush1.msra.mxu0 0.0
        %1010 = vmatprep.subr.mxu0 0.0
        %1011 = vmatpush1.msra.mxu0 0.0
        %1012 = vmatprep.subr.mxu0 0.0
        %1013 = vmatpush1.msra.mxu0 0.0
        %1014 = vmatprep.subr.mxu0 0.0
        %1015 = vmatpush1.msra.mxu0 0.0
        %1016 = vmatprep.subr.mxu0 0.0
        %1017 = vmatpush1.msra.mxu0 0.0
        %1018 = vmatprep.subr.mxu0 0.0
        %1019 = vmatpush1.msra.mxu0 0.0
        %1020 = vmatprep.subr.mxu0 0.0
        %1021 = vmatpush1.msra.mxu0 0.0
        %1022 = vmatprep.subr.mxu0 0.0
        %1023 = vmatpush1.msra.mxu0 0.0
        %1024 = vmatprep.subr.mxu0 0.0
        %1025 = vmatpush1.msra.mxu0 0.0
        %1026 = vmatprep.subr.mxu0 0.0
        %1027 = vmatpush1.msra.mxu0 0.0
        %1028 = vmatprep.subr.mxu0 0.0
        %1029 = vmatpush1.msra.mxu0 0.0
        %1030 = vmatprep.subr.mxu0 0.0
        %1031 = vmatpush1.msra.mxu0 0.0
        %1032 = vmatprep.subr.mxu0 0.0
        %1033 = vmatpush1.msra.mxu0 0.0
        %1034 = vmatprep.subr.mxu0 0.0
        %1035 = vmatpush1.msra.mxu0 0.0
        %1036 = vmatprep.subr.mxu0 0.0
        %1037 = vmatpush1.msra.mxu0 0.0
        %1038 = vmatprep.subr.mxu0 0.0
        %1039 = vmatpush1.msra.mxu0 %v1003
        %1040 = vmatprep.subr.mxu0 0.0
        %1041 = vmatpush2.msra.mxu0 0.0
        %1042 = vmatprep.subr.mxu0 0.0
        %1043 = vmatpush2.msra.mxu0 0.0
        %1044 = vmatprep.subr.mxu0 0.0
        %1045 = vmatpush2.msra.mxu0 0.0
        %1046 = vmatprep.subr.mxu0 0.0
        %1047 = vmatpush2.msra.mxu0 0.0
        %1048 = vmatprep.subr.mxu0 0.0
        %1049 = vmatpush2.msra.mxu0 0.0
        %1050 = vmatprep.subr.mxu0 0.0
        %1051 = vmatpush2.msra.mxu0 0.0
        %1052 = vmatprep.subr.mxu0 0.0
        %1053 = vmatpush2.msra.mxu0 0.0
        %1054 = vmatprep.subr.mxu0 0.0
        %1055 = vmatpush2.msra.mxu0 0.0
        %1056 = vmatprep.subr.mxu0 0.0
        %1057 = vmatpush2.msra.mxu0 0.0
        %1058 = vmatprep.subr.mxu0 0.0
        %1059 = vmatpush2.msra.mxu0 0.0
        %1060 = vmatprep.subr.mxu0 0.0
        %1061 = vmatpush2.msra.mxu0 0.0
        %1062 = vmatprep.subr.mxu0 0.0
        %1063 = vmatpush2.msra.mxu0 0.0
        %1064 = vmatprep.subr.mxu0 0.0
        %1065 = vmatpush2.msra.mxu0 0.0
        %1066 = vmatprep.subr.mxu0 0.0
        %1067 = vmatpush2.msra.mxu0 0.0
        %1068 = vmatprep.subr.mxu0 0.0
        %1069 = vmatpush2.msra.mxu0 0.0
        %1070 = vmatprep.subr.mxu0 0.0
        %1071 = vmatpush2.msra.mxu0 0.0
        %1072 = vmatprep.mubr.f32.mxu0 0.0
        %1073 = vmatmul.mubr.f32.gmra.mxu0 %v1006
        %v1074 = vpop.f32.mrf.mxu0
        %v1075 = vadd.f32 0.0, %v1074
        %v1076 = vpop.f32.mrf.mxu0
        %1077 = vdwg.mxu0
        %1078 = vrot.lane.b32.xlu0 %v576, 104
        %v1079 = vpop.permute.xlu0 %1078
        %1080 = vrot.lane.b32.xlu0 %v573, 72
        %v1081 = vpop.permute.xlu0 %1080
        %v1082 = vsel %vm580, %v1079, 0
        %v1084 = vsel %vm580, %v1081, 0
        %1086 = vmatprep.subr.mxu0 0.0
        %1087 = vmatpush1.xpose.msra.mxu0 0.0
        %1088 = vmatprep.subr.mxu0 0.0
        %1089 = vmatpush1.xpose.msra.mxu0 0.0
        %1090 = vmatprep.subr.mxu0 0.0
        %1091 = vmatpush1.xpose.msra.mxu0 0.0
        %1092 = vmatprep.subr.mxu0 0.0
        %1093 = vmatpush1.xpose.msra.mxu0 0.0
        %1094 = vmatprep.subr.mxu0 0.0
        %1095 = vmatpush1.xpose.msra.mxu0 0.0
        %1096 = vmatprep.subr.mxu0 0.0
        %1097 = vmatpush1.xpose.msra.mxu0 0.0
        %1098 = vmatprep.subr.mxu0 0.0
        %1099 = vmatpush1.xpose.msra.mxu0 0.0
        %1100 = vmatprep.subr.mxu0 0.0
        %1101 = vmatpush1.xpose.msra.mxu0 0.0
        %1102 = vmatprep.subr.mxu0 0.0
        %1103 = vmatpush1.xpose.msra.mxu0 0.0
        %1104 = vmatprep.subr.mxu0 0.0
        %1105 = vmatpush1.xpose.msra.mxu0 0.0
        %1106 = vmatprep.subr.mxu0 0.0
        %1107 = vmatpush1.xpose.msra.mxu0 0.0
        %1108 = vmatprep.subr.mxu0 0.0
        %1109 = vmatpush1.xpose.msra.mxu0 0.0
        %1110 = vmatprep.subr.mxu0 0.0
        %1111 = vmatpush1.xpose.msra.mxu0 0.0
        %1112 = vmatprep.subr.mxu0 0.0
        %1113 = vmatpush1.xpose.msra.mxu0 0.0
        %1114 = vmatprep.subr.mxu0 0.0
        %1115 = vmatpush1.xpose.msra.mxu0 0.0
        %1116 = vmatprep.subr.mxu0 0.0
        %1117 = vmatpush1.xpose.msra.mxu0 %v1084
        %1118 = vmatprep.subr.mxu0 0.0
        %1119 = vmatpush2.xpose.msra.mxu0 0.0
        %1120 = vmatprep.subr.mxu0 0.0
        %1121 = vmatpush2.xpose.msra.mxu0 0.0
        %1122 = vmatprep.subr.mxu0 0.0
        %1123 = vmatpush2.xpose.msra.mxu0 0.0
        %1124 = vmatprep.subr.mxu0 0.0
        %1125 = vmatpush2.xpose.msra.mxu0 0.0
        %1126 = vmatprep.subr.mxu0 0.0
        %1127 = vmatpush2.xpose.msra.mxu0 0.0
        %1128 = vmatprep.subr.mxu0 0.0
        %1129 = vmatpush2.xpose.msra.mxu0 0.0
        %1130 = vmatprep.subr.mxu0 0.0
        %1131 = vmatpush2.xpose.msra.mxu0 0.0
        %1132 = vmatprep.subr.mxu0 0.0
        %1133 = vmatpush2.xpose.msra.mxu0 0.0
        %1134 = vmatprep.subr.mxu0 0.0
        %1135 = vmatpush2.xpose.msra.mxu0 0.0
        %1136 = vmatprep.subr.mxu0 0.0
        %1137 = vmatpush2.xpose.msra.mxu0 0.0
        %1138 = vmatprep.subr.mxu0 0.0
        %1139 = vmatpush2.xpose.msra.mxu0 0.0
        %1140 = vmatprep.subr.mxu0 0.0
        %1141 = vmatpush2.xpose.msra.mxu0 0.0
        %1142 = vmatprep.subr.mxu0 0.0
        %1143 = vmatpush2.xpose.msra.mxu0 0.0
        %1144 = vmatprep.subr.mxu0 0.0
        %1145 = vmatpush2.xpose.msra.mxu0 0.0
        %1146 = vmatprep.subr.mxu0 0.0
        %1147 = vmatpush2.xpose.msra.mxu0 0.0
        %1148 = vmatprep.subr.mxu0 0.0
        %1149 = vmatpush2.xpose.msra.mxu0 0.0
        %1150 = vmatprep.mubr.f32.mxu0 0.0
        %1151 = vmatmul.mubr.f32.gmra.mxu0 %v1082
        %v1152 = vpop.f32.mrf.mxu0
        %v1153 = vadd.f32 0.0, %v1152
        %v1154 = vpop.f32.mrf.mxu0
        %1155 = vdwg.mxu0
        %v1156 = vsel %vm580, %v1153, -inf
        %1157 = vmax.xlane.f32.xlu0 %v1156
        %v1158 = vpop.xlane.xlu0 %1157
        %v1159 = vsub.f32 %v1153, %v1158
        %v1160 = vmul.f32 %v1159, 1.442695
        %v1161 = vpow.pop %v1160
        %v1162 = vsel %vm580, %v1161, 0.0
        %1163 = vadd.xlane.f32.xlu0 %v1162
        %v1164 = vpop.xlane.xlu0 %1163
        %v1165 = vrcp.pop %v1164
        %v1166 = vmul.f32 %v1161, %v1165
        %s1167 = scalar_lea.vmem %s466, 24 [#allocation6]
        %1168 = vst.msk [vmem:[%s1167] sm:$0xff] %vm580, %v1166
        %1169 = vrot.lane.b32.xlu0 %v573, 40
        %v1170 = vpop.permute.xlu0 %1169
        %v1173 = vsel %vm580, %v1166, 0
        %1175 = vmatprep.subr.mxu0 0.0
        %1176 = vmatpush1.msra.mxu0 0.0
        %1177 = vmatprep.subr.mxu0 0.0
        %1178 = vmatpush1.msra.mxu0 0.0
        %1179 = vmatprep.subr.mxu0 0.0
        %1180 = vmatpush1.msra.mxu0 0.0
        %1181 = vmatprep.subr.mxu0 0.0
        %1182 = vmatpush1.msra.mxu0 0.0
        %1183 = vmatprep.subr.mxu0 0.0
        %1184 = vmatpush1.msra.mxu0 0.0
        %1185 = vmatprep.subr.mxu0 0.0
        %1186 = vmatpush1.msra.mxu0 0.0
        %1187 = vmatprep.subr.mxu0 0.0
        %1188 = vmatpush1.msra.mxu0 0.0
        %1189 = vmatprep.subr.mxu0 0.0
        %1190 = vmatpush1.msra.mxu0 0.0
        %1191 = vmatprep.subr.mxu0 0.0
        %1192 = vmatpush1.msra.mxu0 0.0
        %1193 = vmatprep.subr.mxu0 0.0
        %1194 = vmatpush1.msra.mxu0 0.0
        %1195 = vmatprep.subr.mxu0 0.0
        %1196 = vmatpush1.msra.mxu0 0.0
        %1197 = vmatprep.subr.mxu0 0.0
        %1198 = vmatpush1.msra.mxu0 0.0
        %1199 = vmatprep.subr.mxu0 0.0
        %1200 = vmatpush1.msra.mxu0 0.0
        %1201 = vmatprep.subr.mxu0 0.0
        %1202 = vmatpush1.msra.mxu0 0.0
        %1203 = vmatprep.subr.mxu0 0.0
        %1204 = vmatpush1.msra.mxu0 0.0
        %1205 = vmatprep.subr.mxu0 0.0
        %1206 = vmatpush1.msra.mxu0 %v1170
        %1207 = vmatprep.subr.mxu0 0.0
        %1208 = vmatpush2.msra.mxu0 0.0
        %1209 = vmatprep.subr.mxu0 0.0
        %1210 = vmatpush2.msra.mxu0 0.0
        %1211 = vmatprep.subr.mxu0 0.0
        %1212 = vmatpush2.msra.mxu0 0.0
        %1213 = vmatprep.subr.mxu0 0.0
        %1214 = vmatpush2.msra.mxu0 0.0
        %1215 = vmatprep.subr.mxu0 0.0
        %1216 = vmatpush2.msra.mxu0 0.0
        %1217 = vmatprep.subr.mxu0 0.0
        %1218 = vmatpush2.msra.mxu0 0.0
        %1219 = vmatprep.subr.mxu0 0.0
        %1220 = vmatpush2.msra.mxu0 0.0
        %1221 = vmatprep.subr.mxu0 0.0
        %1222 = vmatpush2.msra.mxu0 0.0
        %1223 = vmatprep.subr.mxu0 0.0
        %1224 = vmatpush2.msra.mxu0 0.0
        %1225 = vmatprep.subr.mxu0 0.0
        %1226 = vmatpush2.msra.mxu0 0.0
        %1227 = vmatprep.subr.mxu0 0.0
        %1228 = vmatpush2.msra.mxu0 0.0
        %1229 = vmatprep.subr.mxu0 0.0
        %1230 = vmatpush2.msra.mxu0 0.0
        %1231 = vmatprep.subr.mxu0 0.0
        %1232 = vmatpush2.msra.mxu0 0.0
        %1233 = vmatprep.subr.mxu0 0.0
        %1234 = vmatpush2.msra.mxu0 0.0
        %1235 = vmatprep.subr.mxu0 0.0
        %1236 = vmatpush2.msra.mxu0 0.0
        %1237 = vmatprep.subr.mxu0 0.0
        %1238 = vmatpush2.msra.mxu0 0.0
        %1239 = vmatprep.mubr.f32.mxu0 0.0
        %1240 = vmatmul.mubr.f32.gmra.mxu0 %v1173
        %v1241 = vpop.f32.mrf.mxu0
        %v1242 = vadd.f32 0.0, %v1241
        %v1243 = vpop.f32.mrf.mxu0
        %1244 = vdwg.mxu0
        %1246 = vrot.lane.b32.xlu0 %v908, 8
        %v1247 = vpop.permute.xlu0 %1246
        %1250 = vrot.lane.b32.xlu0 %v1075, 16
        %v1251 = vpop.permute.xlu0 %1250
        %1254 = vrot.lane.b32.xlu0 %v1242, 24
        %v1255 = vpop.permute.xlu0 %1254
        %v1257 = vsel %vm580, %v741, %v1247
        %vm1258 = vcmask 130048
        %v1259 = vsel %vm1258, %v1257, %v1251
        %vm1260 = vcmask 195584
        %v1261 = vsel %vm1260, %v1259, %v1255
        %v1262 = vld [vmem:[%s4] sm:$0xff]
        %v1263 = vld [vmem:[%s4 + $0x8] sm:$0xff]
        %v1264 = vld [vmem:[%s4 + $0x10] sm:$0xff]
        %v1265 = vld [vmem:[%s4 + $0x18] sm:$0xff]
        %v1266 = vld [vmem:[%s5] sm:$0x1]
        %v1268 = vlaneseq
        %v1269 = vshrl.u32 %v1268, 7
        %v1270 = vsub.s32 0, %v1269
        %v1271 = vrot.slane %v1266, %v1270
        %v1274 = vsel %vm470, %v1261, 0
        %1276 = vmatprep.subr.mxu0 0.0
        %1277 = vmatpush1.msra.mxu0 0.0
        %1278 = vmatprep.subr.mxu0 0.0
        %1279 = vmatpush1.msra.mxu0 0.0
        %1280 = vmatprep.subr.mxu0 0.0
        %1281 = vmatpush1.msra.mxu0 0.0
        %1282 = vmatprep.subr.mxu0 0.0
        %1283 = vmatpush1.msra.mxu0 0.0
        %1284 = vmatprep.subr.mxu0 0.0
        %1285 = vmatpush1.msra.mxu0 0.0
        %1286 = vmatprep.subr.mxu0 0.0
        %1287 = vmatpush1.msra.mxu0 0.0
        %1288 = vmatprep.subr.mxu0 0.0
        %1289 = vmatpush1.msra.mxu0 0.0
        %1290 = vmatprep.subr.mxu0 0.0
        %1291 = vmatpush1.msra.mxu0 0.0
        %1292 = vmatprep.subr.mxu0 0.0
        %1293 = vmatpush1.msra.mxu0 0.0
        %1294 = vmatprep.subr.mxu0 0.0
        %1295 = vmatpush1.msra.mxu0 0.0
        %1296 = vmatprep.subr.mxu0 0.0
        %1297 = vmatpush1.msra.mxu0 0.0
        %1298 = vmatprep.subr.mxu0 0.0
        %1299 = vmatpush1.msra.mxu0 0.0
        %1300 = vmatprep.subr.mxu0 0.0
        %1301 = vmatpush1.msra.mxu0 %v1265
        %1302 = vmatprep.subr.mxu0 0.0
        %1303 = vmatpush1.msra.mxu0 %v1264
        %1304 = vmatprep.subr.mxu0 0.0
        %1305 = vmatpush1.msra.mxu0 %v1263
        %1306 = vmatprep.subr.mxu0 0.0
        %1307 = vmatpush1.msra.mxu0 %v1262
        %1308 = vmatprep.subr.mxu0 0.0
        %1309 = vmatpush2.msra.mxu0 0.0
        %1310 = vmatprep.subr.mxu0 0.0
        %1311 = vmatpush2.msra.mxu0 0.0
        %1312 = vmatprep.subr.mxu0 0.0
        %1313 = vmatpush2.msra.mxu0 0.0
        %1314 = vmatprep.subr.mxu0 0.0
        %1315 = vmatpush2.msra.mxu0 0.0
        %1316 = vmatprep.subr.mxu0 0.0
        %1317 = vmatpush2.msra.mxu0 0.0
        %1318 = vmatprep.subr.mxu0 0.0
        %1319 = vmatpush2.msra.mxu0 0.0
        %1320 = vmatprep.subr.mxu0 0.0
        %1321 = vmatpush2.msra.mxu0 0.0
        %1322 = vmatprep.subr.mxu0 0.0
        %1323 = vmatpush2.msra.mxu0 0.0
        %1324 = vmatprep.subr.mxu0 0.0
        %1325 = vmatpush2.msra.mxu0 0.0
        %1326 = vmatprep.subr.mxu0 0.0
        %1327 = vmatpush2.msra.mxu0 0.0
        %1328 = vmatprep.subr.mxu0 0.0
        %1329 = vmatpush2.msra.mxu0 0.0
        %1330 = vmatprep.subr.mxu0 0.0
        %1331 = vmatpush2.msra.mxu0 0.0
        %1332 = vmatprep.subr.mxu0 0.0
        %1333 = vmatpush2.msra.mxu0 0.0
        %1334 = vmatprep.subr.mxu0 0.0
        %1335 = vmatpush2.msra.mxu0 0.0
        %1336 = vmatprep.subr.mxu0 0.0
        %1337 = vmatpush2.msra.mxu0 0.0
        %1338 = vmatprep.subr.mxu0 0.0
        %1339 = vmatpush2.msra.mxu0 0.0
        %1340 = vmatprep.mubr.f32.mxu0 0.0
        %1341 = vmatmul.mubr.f32.gmra.mxu0 %v1274
        %v1342 = vpop.f32.mrf.mxu0
        %v1343 = vadd.f32 %v1271, %v1342
        %v1344 = vpop.f32.mrf.mxu0
        %1345 = vdwg.mxu0
        %v1346 = vadd.f32 %v1343, %v467
        %v1347 = vld [vmem:[%s6] sm:$0x1]
        %v1348 = vld [vmem:[%s7] sm:$0x1]
        %v1349 = vsel %vm470, %v1346, 0.0
        %1350 = vadd.xlane.f32.xlu0 %v1349
        %v1351 = vpop.xlane.xlu0 %1350
        %v1352 = vmul.f32 %v1351, %v474
        %v1353 = vsub.f32 %v1346, %v1352
        %v1354 = vmul.f32 %v1353, %v1353
        %v1355 = vsel %vm470, %v1354, 0.0
        %1356 = vadd.xlane.f32.xlu0 %v1355
        %v1357 = vpop.xlane.xlu0 %1356
        %v1358 = vmul.f32 %v1357, %v474
        %v1359 = vadd.f32 %v1358, 1e-05
        %v1360 = vrsqrt.pop %v1359
        %v1361 = vmul.f32 %v1353, %v1360
        %v1363 = vlaneseq
        %v1364 = vshrl.u32 %v1363, 7
        %v1365 = vsub.s32 0, %v1364
        %v1366 = vrot.slane %v1347, %v1365
        %v1368 = vmul.f32 %v1361, %v1366
        %v1370 = vlaneseq
        %v1371 = vshrl.u32 %v1370, 7
        %v1372 = vsub.s32 0, %v1371
        %v1373 = vrot.slane %v1348, %v1372
        %v1375 = vadd.f32 %v1368, %v1373
        %v1376 = vld [vmem:[%s8] sm:$0xff]
        %v1377 = vld [vmem:[%s8 + $0x8] sm:$0xff]
        %v1378 = vld [vmem:[%s8 + $0x10] sm:$0xff]
        %v1379 = vld [vmem:[%s8 + $0x18] sm:$0xff]
        %v1380 = vld [vmem:[%s9] sm:$0x1]
        %v1382 = vlaneseq
        %v1383 = vshrl.u32 %v1382, 7
        %v1384 = vsub.s32 0, %v1383
        %v1385 = vrot.slane %v1380, %v1384
        %v1388 = vsel %vm470, %v1375, 0
        %1390 = vmatprep.subr.mxu0 0.0
        %1391 = vmatpush1.msra.mxu0 0.0
        %1392 = vmatprep.subr.mxu0 0.0
        %1393 = vmatpush1.msra.mxu0 0.0
        %1394 = vmatprep.subr.mxu0 0.0
        %1395 = vmatpush1.msra.mxu0 0.0
        %1396 = vmatprep.subr.mxu0 0.0
        %1397 = vmatpush1.msra.mxu0 0.0
        %1398 = vmatprep.subr.mxu0 0.0
        %1399 = vmatpush1.msra.mxu0 0.0
        %1400 = vmatprep.subr.mxu0 0.0
        %1401 = vmatpush1.msra.mxu0 0.0
        %1402 = vmatprep.subr.mxu0 0.0
        %1403 = vmatpush1.msra.mxu0 0.0
        %1404 = vmatprep.subr.mxu0 0.0
        %1405 = vmatpush1.msra.mxu0 0.0
        %1406 = vmatprep.subr.mxu0 0.0
        %1407 = vmatpush1.msra.mxu0 0.0
        %1408 = vmatprep.subr.mxu0 0.0
        %1409 = vmatpush1.msra.mxu0 0.0
        %1410 = vmatprep.subr.mxu0 0.0
        %1411 = vmatpush1.msra.mxu0 0.0
        %1412 = vmatprep.subr.mxu0 0.0
        %1413 = vmatpush1.msra.mxu0 0.0
        %1414 = vmatprep.subr.mxu0 0.0
        %1415 = vmatpush1.msra.mxu0 %v1379
        %1416 = vmatprep.subr.mxu0 0.0
        %1417 = vmatpush1.msra.mxu0 %v1378
        %1418 = vmatprep.subr.mxu0 0.0
        %1419 = vmatpush1.msra.mxu0 %v1377
        %1420 = vmatprep.subr.mxu0 0.0
        %1421 = vmatpush1.msra.mxu0 %v1376
        %1422 = vmatprep.subr.mxu0 0.0
        %1423 = vmatpush2.msra.mxu0 0.0
        %1424 = vmatprep.subr.mxu0 0.0
        %1425 = vmatpush2.msra.mxu0 0.0
        %1426 = vmatprep.subr.mxu0 0.0
        %1427 = vmatpush2.msra.mxu0 0.0
        %1428 = vmatprep.subr.mxu0 0.0
        %1429 = vmatpush2.msra.mxu0 0.0
        %1430 = vmatprep.subr.mxu0 0.0
        %1431 = vmatpush2.msra.mxu0 0.0
        %1432 = vmatprep.subr.mxu0 0.0
        %1433 = vmatpush2.msra.mxu0 0.0
        %1434 = vmatprep.subr.mxu0 0.0
        %1435 = vmatpush2.msra.mxu0 0.0
        %1436 = vmatprep.subr.mxu0 0.0
        %1437 = vmatpush2.msra.mxu0 0.0
        %1438 = vmatprep.subr.mxu0 0.0
        %1439 = vmatpush2.msra.mxu0 0.0
        %1440 = vmatprep.subr.mxu0 0.0
        %1441 = vmatpush2.msra.mxu0 0.0
        %1442 = vmatprep.subr.mxu0 0.0
        %1443 = vmatpush2.msra.mxu0 0.0
        %1444 = vmatprep.subr.mxu0 0.0
        %1445 = vmatpush2.msra.mxu0 0.0
        %1446 = vmatprep.subr.mxu0 0.0
        %1447 = vmatpush2.msra.mxu0 0.0
        %1448 = vmatprep.subr.mxu0 0.0
        %1449 = vmatpush2.msra.mxu0 0.0
        %1450 = vmatprep.subr.mxu0 0.0
        %1451 = vmatpush2.msra.mxu0 0.0
        %1452 = vmatprep.subr.mxu0 0.0
        %1453 = vmatpush2.msra.mxu0 0.0
        %1454 = vmatprep.mubr.f32.mxu0 0.0
        %1455 = vmatmul.mubr.f32.gmra.mxu0 %v1388
        %v1456 = vpop.f32.mrf.mxu0
        %v1457 = vadd.f32 %v1385, %v1456
        %v1458 = vpop.f32.mrf.mxu0
        %1459 = vdwg.mxu0
        %v1460 = vmul.f32 %v1457, 0.5
        %v1461 = vmul.f32 %v1457, 0.70710677
        %vm1462 = vcmp.ge.f32.partialorder %v1461, 0.0
        %v1463 = vsel %vm1462, 1.0, -1.0
        %v1464 = vand.u32 2147483647, %v1461
        %v1465 = vmul.f32 %v1464, 0.3275911
        %v1466 = vadd.f32 %v1465, 1.0
        %v1467 = vrcp.pop %v1466
        %v1468 = vmul.f32 1.0, %v1467
        %v1469 = vmul.f32 %v1468, 1.0614054
        %v1470 = vadd.f32 %v1469, -1.4531521
        %v1471 = vmul.f32 %v1470, %v1468
        %v1472 = vadd.f32 %v1471, 1.4214138
        %v1473 = vmul.f32 %v1472, %v1468
        %v1474 = vadd.f32 %v1473, -0.28449672
        %v1475 = vmul.f32 %v1474, %v1468
        %v1476 = vadd.f32 %v1475, 0.2548296
        %v1477 = vmul.f32 %v1476, %v1468
        %v1478 = vsub.f32 0.0, %v1464
        %v1479 = vmul.f32 %v1478, %v1464
        %v1480 = vmul.f32 %v1479, 1.442695
        %v1481 = vpow.pop %v1480
        %v1482 = vmul.f32 %v1477, %v1481
        %v1483 = vsub.f32 1.0, %v1482
        %v1484 = vmul.f32 %v1463, %v1483
        %v1485 = vadd.f32 %v1484, 1.0
        %v1486 = vmul.f32 %v1460, %v1485
        %v1487 = vld [vmem:[%s10] sm:$0xff]
        %v1488 = vld [vmem:[%s10 + $0x8] sm:$0xff]
        %v1489 = vld [vmem:[%s10 + $0x10] sm:$0xff]
        %v1490 = vld [vmem:[%s10 + $0x18] sm:$0xff]
        %v1491 = vld [vmem:[%s10 + $0x20] sm:$0xff]
        %v1492 = vld [vmem:[%s10 + $0x28] sm:$0xff]
        %v1493 = vld [vmem:[%s10 + $0x30] sm:$0xff]
        %v1494 = vld [vmem:[%s10 + $0x38] sm:$0xff]
        %v1495 = vld [vmem:[%s11] sm:$0x1]
        %v1497 = vlaneseq
        %v1498 = vshrl.u32 %v1497, 7
        %v1499 = vsub.s32 0, %v1498
        %v1500 = vrot.slane %v1495, %v1499
        %vm1502 = vcmask 523264
        %v1504 = vsel %vm1502, %v1486, 0
        %1506 = vmatprep.subr.mxu0 0.0
        %1507 = vmatpush1.msra.mxu0 0.0
        %1508 = vmatprep.subr.mxu0 0.0
        %1509 = vmatpush1.msra.mxu0 0.0
        %1510 = vmatprep.subr.mxu0 0.0
        %1511 = vmatpush1.msra.mxu0 0.0
        %1512 = vmatprep.subr.mxu0 0.0
        %1513 = vmatpush1.msra.mxu0 0.0
        %1514 = vmatprep.subr.mxu0 0.0
        %1515 = vmatpush1.msra.mxu0 0.0
        %1516 = vmatprep.subr.mxu0 0.0
        %1517 = vmatpush1.msra.mxu0 0.0
        %1518 = vmatprep.subr.mxu0 0.0
        %1519 = vmatpush1.msra.mxu0 0.0
        %1520 = vmatprep.subr.mxu0 0.0
        %1521 = vmatpush1.msra.mxu0 0.0
        %1522 = vmatprep.subr.mxu0 0.0
        %1523 = vmatpush1.msra.mxu0 %v1494
        %1524 = vmatprep.subr.mxu0 0.0
        %1525 = vmatpush1.msra.mxu0 %v1493
        %1526 = vmatprep.subr.mxu0 0.0
        %1527 = vmatpush1.msra.mxu0 %v1492
        %1528 = vmatprep.subr.mxu0 0.0
        %1529 = vmatpush1.msra.mxu0 %v1491
        %1530 = vmatprep.subr.mxu0 0.0
        %1531 = vmatpush1.msra.mxu0 %v1490
        %1532 = vmatprep.subr.mxu0 0.0
        %1533 = vmatpush1.msra.mxu0 %v1489
        %1534 = vmatprep.subr.mxu0 0.0
        %1535 = vmatpush1.msra.mxu0 %v1488
        %1536 = vmatprep.subr.mxu0 0.0
        %1537 = vmatpush1.msra.mxu0 %v1487
        %1538 = vmatprep.subr.mxu0 0.0
        %1539 = vmatpush2.msra.mxu0 0.0
        %1540 = vmatprep.subr.mxu0 0.0
        %1541 = vmatpush2.msra.mxu0 0.0
        %1542 = vmatprep.subr.mxu0 0.0
        %1543 = vmatpush2.msra.mxu0 0.0
        %1544 = vmatprep.subr.mxu0 0.0
        %1545 = vmatpush2.msra.mxu0 0.0
        %1546 = vmatprep.subr.mxu0 0.0
        %1547 = vmatpush2.msra.mxu0 0.0
        %1548 = vmatprep.subr.mxu0 0.0
        %1549 = vmatpush2.msra.mxu0 0.0
        %1550 = vmatprep.subr.mxu0 0.0
        %1551 = vmatpush2.msra.mxu0 0.0
        %1552 = vmatprep.subr.mxu0 0.0
        %1553 = vmatpush2.msra.mxu0 0.0
        %1554 = vmatprep.subr.mxu0 0.0
        %1555 = vmatpush2.msra.mxu0 0.0
        %1556 = vmatprep.subr.mxu0 0.0
        %1557 = vmatpush2.msra.mxu0 0.0
        %1558 = vmatprep.subr.mxu0 0.0
        %1559 = vmatpush2.msra.mxu0 0.0
        %1560 = vmatprep.subr.mxu0 0.0
        %1561 = vmatpush2.msra.mxu0 0.0
        %1562 = vmatprep.subr.mxu0 0.0
        %1563 = vmatpush2.msra.mxu0 0.0
        %1564 = vmatprep.subr.mxu0 0.0
        %1565 = vmatpush2.msra.mxu0 0.0
        %1566 = vmatprep.subr.mxu0 0.0
        %1567 = vmatpush2.msra.mxu0 0.0
        %1568 = vmatprep.subr.mxu0 0.0
        %1569 = vmatpush2.msra.mxu0 0.0
        %1570 = vmatprep.mubr.f32.mxu0 0.0
        %1571 = vmatmul.mubr.f32.gmra.mxu0 %v1504
        %v1572 = vpop.f32.mrf.mxu0
        %v1573 = vadd.f32 %v1500, %v1572
        %v1574 = vpop.f32.mrf.mxu0
        %1575 = vdwg.mxu0
        %v1576 = vadd.f32 %v1573, %v1346
        %1577 = vst.msk [vmem:[%s459] sm:$0xff] %vm470, %v1576
        %s1578 = sand.u32 %s299, 1
        %s1579 = scalar_lea.sflag [#allocation4], %s1578
        %s1580 = sand.u32 %s299, 1
        %s1581 = smul.addr %s1580, 8
        %s1582 = scalar_lea.vmem [#allocation5], %s1581
        %s1583 = sand.u32 %s325, 1
        %s1584 = scalar_lea.sflag [#allocation7], %s1583
        %s1585 = sand.u32 %s325, 1
        %s1586 = smul.addr %s1585, 32
        %s1587 = scalar_lea.vmem [#allocation6], %s1586
        // Predicated region
        $region73: #{tpu_custom_call.1} parent=67 // pred_check
          %p1588 = pneg %p309
        $region74: #{tpu_custom_call.1} parent=67 // pred_check_branch
          %1590 = sbr.rel (%p1588) target = $region76
        $region75: #{tpu_custom_call.1} parent=67 // pred_region
          %s1592 = ssub.s32 128, 128
          %1593 = vsyncadd %s1579, %s1592
          %s1594 = smul.addr %s34, 128
          %s1595 = scalar_lea.hbm %s12, %s1594
          %s1597 = sshll.u32 %s1582, 4
          %s1598 = int_to_ptr.vmem [resolvable:$true] %s1597
          %1600 = dma.vmem_to_hbm [thread:$0]  %s1598, 128, %s1595, %s1579
        $region76: #{tpu_custom_call.1} parent=67 // pred_fallthru
          _
        // Predicated region
        $region77: #{tpu_custom_call.1} parent=67 // pred_check
          %p1601 = pneg %p335
        $region78: #{tpu_custom_call.1} parent=67 // pred_check_branch
          %1603 = sbr.rel (%p1601) target = $region80
        $region79: #{tpu_custom_call.1} parent=67 // pred_region
          %s1605 = ssub.s32 512, 512
          %1606 = vsyncadd %s1584, %s1605
          %s1607 = smul.addr %s34, 4
          %s1608 = smul.addr %s1607, 128
          %s1609 = scalar_lea.hbm %s13, %s1608
          %s1610 = sshll.u32 %s1587, 4
          %s1611 = int_to_ptr.vmem [resolvable:$true] %s1610
          %1616 = dma.vmem_to_hbm [thread:$0]  %s1611, 512, %s1609, %s1584, 128, 128, 8
        $region80: #{tpu_custom_call.1} parent=67 // pred_fallthru
          _
      $region68: #{tpu_custom_call.1} parent=5 // pred_fallthru
        _
      %p1617 = scmp.le.s32.totalorder 2, %s29
      // Predicated region
      $region81: #{tpu_custom_call.1} parent=5 // pred_check
        %p1618 = pneg %p1617
      $region82: #{tpu_custom_call.1} parent=5 // pred_check_branch
        %1620 = sbr.rel (%p1618) target = $region84
      $region83: #{tpu_custom_call.1} parent=5 // pred_region
        %s1621 = ssub.s32 %s29, 2
        // Predicated region
        $region85: #{tpu_custom_call.1} parent=83 // pred_check
          %p1622 = pneg %p315
        $region86: #{tpu_custom_call.1} parent=83 // pred_check_branch
          %1624 = sbr.rel (%p1622) target = $region88
        $region87: #{tpu_custom_call.1} parent=83 // pred_region
          %s1625 = sand.u32 %s300, 1
          %s1626 = scalar_lea.sflag [#allocation4], %s1625
          %s1627 = sand.u32 %s300, 1
          %s1628 = smul.addr %s1627, 8
          %s1629 = scalar_lea.vmem [#allocation5], %s1628
          %1630 = dma.done %s1626, 128
        $region88: #{tpu_custom_call.1} parent=83 // pred_fallthru
          _
        // Predicated region
        $region89: #{tpu_custom_call.1} parent=83 // pred_check
          %p1631 = pneg %p341
        $region90: #{tpu_custom_call.1} parent=83 // pred_check_branch
          %1633 = sbr.rel (%p1631) target = $region92
        $region91: #{tpu_custom_call.1} parent=83 // pred_region
          %s1634 = sand.u32 %s326, 1
          %s1635 = scalar_lea.sflag [#allocation7], %s1634
          %s1636 = sand.u32 %s326, 1
          %s1637 = smul.addr %s1636, 32
          %s1638 = scalar_lea.vmem [#allocation6], %s1637
          %1639 = dma.done %s1635, 512
        $region92: #{tpu_custom_call.1} parent=83 // pred_fallthru
          _
      $region84: #{tpu_custom_call.1} parent=5 // pred_fallthru
        _
    $region6: #{tpu_custom_call.1} parent=1 // loop_footer
      %s33 = sadd.s32 1, %s29
    $region7: #{tpu_custom_call.1} parent=1 // loop_footer_branch
      %28 = sbr.rel target = $region3
    $region8: #{tpu_custom_call.1} parent=1 // loop_exit
      _
    %1640 = vsyncpa [#allocation3], 1
    %s1641 = scalar_lea.sflag [#allocation3], 1
    %1642 = vsyncpa %s1641, 1
    %1643 = vsyncpa [#allocation4], 1
    %s1644 = scalar_lea.sflag [#allocation4], 1
    %1645 = vsyncpa %s1644, 1
    %1646 = vsyncpa [#allocation7], 1
    %s1647 = scalar_lea.sflag [#allocation7], 1
    %1648 = vsyncpa %s1647, 1

</llo_original>
